<compile_context>
chip_gen: v7x
topology: tpu7x:2x2x1
jax: 0.10.0
libtpu: 0.0.40
codegen_flags: <defaults>
</compile_context>

<pallas_src>
import functools

import jax
import jax.numpy as jnp
from jax import lax
from jax.experimental import pallas as pl
from jax.experimental.pallas import tpu as pltpu

LANE = 128
SUBLANE = 8


def _round_up(x, m):
    return (x + m - 1) // m * m


# ----------------------------------------------------------------------------
# Fused kernel: conv matmul + SE + maxpool for one batch element
# ----------------------------------------------------------------------------
def _fused_tokenizer_kernel(p_ref, wc_ref, w1t_ref, b1_ref, w2t_ref, b2_ref,
                            o_ref, ys_ref, *, M, Cpad, Hc, Wc, Hp, Wp, pk, ps, pp):
    # p_ref  : (M, KKC)  bf16  im2col patches for one image (M = Hc*Wc, KKC = k*k*Cin)
    # wc_ref : (KKC, Cpad) bf16  conv weight in im2col layout, zero-padded output channels
    # w1t_ref: (Cpad, bott_pad) bf16   b1_ref: (1, bott_pad) f32
    # w2t_ref: (bott_pad, Cpad) bf16   b2_ref: (1, Cpad) f32
    # o_ref  : (Hp*Wp, Cpad) f32  pooled tokens (lane-dense channel axis)
    # ys_ref : (M, Cpad) f32  VMEM scratch holding the UN-scaled conv activation

    # ---- Conv2d (bias=False): ONE K = k*k*Cin MXU matmul, bf16 in / f32 accumulate ----
    acc = jnp.dot(p_ref[...], wc_ref[...], preferred_element_type=jnp.float32)   # (M, Cpad)

    # ---- SE global average pool on the MXU (ones-vector dot; keeps the XLU free) ----
    pooled = jnp.dot(jnp.ones((1, M), jnp.float32), acc,
                     preferred_element_type=jnp.float32) * (1.0 / M)             # (1, Cpad)

    # Park the raw conv activation in VMEM; the SE rescale commutes with max (scale > 0),
    # so it is applied only to the pooled (Hp*Wp, Cpad) outputs in the epilogue.
    ys_ref[...] = acc

    # ---- SE excitation: FC -> ReLU -> FC -> exact sigmoid ----
    h = jnp.dot(pooled.astype(jnp.bfloat16), w1t_ref[...],
                preferred_element_type=jnp.float32) + b1_ref[...]
    h = jnp.maximum(h, 0.0)
    logits = jnp.dot(h.astype(jnp.bfloat16), w2t_ref[...],
                     preferred_element_type=jnp.float32) + b2_ref[...]
    scale = 1.0 / (1.0 + jnp.exp(-logits))                 # exact sigmoid, (1, Cpad)
    scale_b = jnp.broadcast_to(scale, (Wp, Cpad))          # hoisted out of the pooling loop

    # ---- MaxPool2d(3, stride 2, pad 1), fused + vectorized along W ----
    # Per output row i: strided (stride-2) sublane reads pull the even / odd conv columns as
    # (Wp, Cpad) blocks; the left-neighbour column (2j-1) is the previous output's odd column,
    # obtained with one sublane roll; result is written as one dense (Wp, Cpad) store.
    left_valid = lax.broadcasted_iota(jnp.int32, (Wp, Cpad), 0) >= 1
    for i in range(Hp):
        rows = [r for r in range(i * ps - pp, i * ps - pp + pk) if 0 <= r < Hc]
        evenmax = oddmax = None
        for r in rows:
            ev = ys_ref[pl.ds(r * Wc, Wp, stride=ps), :]        # cols 2j
            od = ys_ref[pl.ds(r * Wc + 1, Wp, stride=ps), :]    # cols 2j+1
            evenmax = ev if evenmax is None else jnp.maximum(evenmax, ev)
            oddmax = od if oddmax is None else jnp.maximum(oddmax, od)
        prev = pltpu.roll(oddmax, shift=1, axis=0)               # cols 2j-1 (wrap at j=0)
        prev = jnp.where(left_valid, prev, evenmax)              # col -1 is pool padding -> drop
        blk = jnp.maximum(jnp.maximum(evenmax, oddmax), prev) * scale_b
        o_ref[i * Wp:(i + 1) * Wp, :] = blk


# ----------------------------------------------------------------------------
# Wrapper: im2col + layout prep (XLA) + single fused pallas_call
# ----------------------------------------------------------------------------
def tokenizer_se_forward(x_nchw, params, *, kernel_size, stride, padding,
                         pooling_kernel_size=3, pooling_stride=2, pooling_padding=1):
    conv_w, w1, b1, w2, b2 = params
    B, Cin, H, W = x_nchw.shape
    Cout = conv_w.shape[0]
    k = kernel_size

    Hc = (H + 2 * padding - k) // stride + 1
    Wc = (W + 2 * padding - k) // stride + 1
    pk, ps, pp = pooling_kernel_size, pooling_stride, pooling_padding
    Hp = (Hc + 2 * pp - pk) // ps + 1
    Wp = (Wc + 2 * pp - pk) // ps + 1
    assert (pk, ps, pp) == (3, 2, 1), "fused pooling epilogue assumes MaxPool2d(3, stride 2, pad 1)"
    assert Wc % SUBLANE == 0, "post-conv width must be a multiple of 8 for the fused kernel"

    M = Hc * Wc
    KKC = k * k * Cin
    Cpad = _round_up(Cout, LANE)                   # lane-dense channel axis
    bott = w1.shape[0]
    bott_pad = _round_up(max(bott, 1), SUBLANE)

    # im2col in XLA: (B, M, k*k*Cin) patches -> one dense matmul in the kernel.
    xp = jnp.transpose(x_nchw, (0, 2, 3, 1)).astype(jnp.float32)
    xp = jnp.pad(xp, ((0, 0), (padding, padding), (padding, padding), (0, 0)))
    taps = []
    for kh in range(k):
        for kw in range(k):
            taps.append(xp[:, kh:kh + (Hc - 1) * stride + 1:stride,
                           kw:kw + (Wc - 1) * stride + 1:stride, :])
    patches = jnp.concatenate(taps, axis=-1).reshape(B, M, KKC).astype(jnp.bfloat16)

    # Conv weight in the matching (kh, kw, cin) -> Cout layout; padded output channels are zero,
    # so padded activations are exactly 0 and SE/maxpool on them is harmless.
    wc = jnp.transpose(conv_w, (2, 3, 1, 0)).reshape(KKC, Cout)
    wc = jnp.pad(wc, ((0, 0), (0, Cpad - Cout))).astype(jnp.bfloat16)

    w1t = jnp.pad(w1.T, ((0, Cpad - Cout), (0, bott_pad - bott))).astype(jnp.bfloat16)
    b1p = jnp.pad(b1, (0, bott_pad - bott)).reshape(1, bott_pad).astype(jnp.float32)
    w2t = jnp.pad(w2.T, ((0, bott_pad - bott), (0, Cpad - Cout))).astype(jnp.bfloat16)
    b2p = jnp.pad(b2, (0, Cpad - Cout)).reshape(1, Cpad).astype(jnp.float32)

    kernel = functools.partial(_fused_tokenizer_kernel, M=M, Cpad=Cpad, Hc=Hc, Wc=Wc,
                               Hp=Hp, Wp=Wp, pk=pk, ps=ps, pp=pp)

    flops = (2 * B * M * KKC * Cout          # conv matmul
             + 2 * B * M * Cout              # SE global pool (ones dot)
             + 4 * B * Cout * max(bott, 1)   # SE FCs
             + B * Hp * Wp * Cout * pk * pk)  # pooling compares
    bytes_accessed = (patches.size * 2 + wc.size * 2 + w1t.size * 2 + w2t.size * 2
                      + b1p.size * 4 + b2p.size * 4 + B * Hp * Wp * Cpad * 4)

    out_padded = pl.pallas_call(
        kernel,
        out_shape=jax.ShapeDtypeStruct((B, Hp * Wp, Cpad), jnp.float32),
        grid=(B,),
        in_specs=[
            pl.BlockSpec((None, M, KKC), lambda b: (b, 0, 0)),
            pl.BlockSpec((KKC, Cpad), lambda b: (0, 0)),
            pl.BlockSpec((Cpad, bott_pad), lambda b: (0, 0)),
            pl.BlockSpec((1, bott_pad), lambda b: (0, 0)),
            pl.BlockSpec((bott_pad, Cpad), lambda b: (0, 0)),
            pl.BlockSpec((1, Cpad), lambda b: (0, 0)),
        ],
        out_specs=pl.BlockSpec((None, Hp * Wp, Cpad), lambda b: (b, 0, 0)),
        scratch_shapes=[pltpu.VMEM((M, Cpad), jnp.float32)],   # un-scaled conv activation
        compiler_params=pltpu.CompilerParams(dimension_semantics=("parallel",)),
        cost_estimate=pl.CostEstimate(flops=int(flops), transcendentals=int(B * Cpad),
                                      bytes_accessed=int(bytes_accessed)),
    )(patches, wc, w1t, b1p, w2t, b2p)

    # nn.Flatten(2,3) on NCHW then transpose(-2,-1) == (B, Hp*Wp, C); drop lane padding.
    return out_padded[:, :, :Cout]


# ----------------------------------------------------------------------------
# Pure-JAX reference (correctness check only)
# ----------------------------------------------------------------------------
def reference_forward(x, conv_w, w1, b1, w2, b2, stride, padding):
    y = lax.conv_general_dilated(x, conv_w, window_strides=(stride, stride),
                                 padding=((padding, padding), (padding, padding)),
                                 dimension_numbers=('NCHW', 'OIHW', 'NCHW'))
    pooled = jnp.mean(y, axis=(2, 3))
    h = jnp.maximum(pooled @ w1.T + b1, 0.0)
    s = jax.nn.sigmoid(h @ w2.T + b2)
    y = y * s[:, :, None, None]
    y = lax.reduce_window(y, -jnp.inf, lax.max, (1, 1, 3, 3), (1, 1, 2, 2),
                          ((0, 0), (0, 0), (1, 1), (1, 1)))
    B, C, Hp, Wp = y.shape
    return y.reshape(B, C, Hp * Wp).transpose(0, 2, 1)


# ----------------------------------------------------------------------------
# Main
# ----------------------------------------------------------------------------
if __name__ == "__main__":
    # TokenizerSE(kernel_size=3, stride=1, padding=1, n_conv_layers=1,
    #             n_input_channels=4, n_output_channels=32)
    B, Cin, H, W = 2, 4, 16, 16
    Cout = 32
    kernel_size, stride, padding = 3, 1, 1
    reduction_ratio = 16
    bott = Cout // reduction_ratio  # 2

    key = jax.random.PRNGKey(0)
    k_x, k_cw, k_w1, k_b1, k_w2, k_b2 = jax.random.split(key, 6)

    x = jax.random.normal(k_x, (B, Cin, H, W), jnp.float32)

    fan_in = Cin * kernel_size * kernel_size
    conv_w = jax.random.normal(k_cw, (Cout, Cin, kernel_size, kernel_size),
                               jnp.float32) * (2.0 / fan_in) ** 0.5
    w1 = jax.random.normal(k_w1, (bott, Cout), jnp.float32) * (1.0 / Cout) ** 0.5
    b1 = jax.random.normal(k_b1, (bott,), jnp.float32) * 0.01
    w2 = jax.random.normal(k_w2, (Cout, bott), jnp.float32) * (1.0 / max(bott, 1)) ** 0.5
    b2 = jax.random.normal(k_b2, (Cout,), jnp.float32) * 0.01
    params = (conv_w, w1, b1, w2, b2)

    fwd = jax.jit(functools.partial(tokenizer_se_forward, kernel_size=kernel_size,
                                    stride=stride, padding=padding))
    out = jax.block_until_ready(fwd(x, params))

    ref = reference_forward(x, conv_w, w1, b1, w2, b2, stride, padding)
    assert out.shape == ref.shape == (B, 64, Cout), (out.shape, ref.shape)
    err = float(jnp.max(jnp.abs(out - ref)))
    assert err < 5e-2, err   # tolerance covers the bf16 MXU operands (f32 accumulation)
    print("KERNEL_OK")
</pallas_src>

<mosaic_0001>
module attributes {stable_mosaic.version = 11 : i64} {
  func.func @_fused_tokenizer_kernel(%arg0: i32, %arg1: memref<1x256x36xbf16, #tpu.memory_space<vmem>>, %arg2: memref<36x128xbf16, #tpu.memory_space<vmem>>, %arg3: memref<128x8xbf16, #tpu.memory_space<vmem>>, %arg4: memref<1x8xf32, #tpu.memory_space<vmem>>, %arg5: memref<8x128xbf16, #tpu.memory_space<vmem>>, %arg6: memref<1x128xf32, #tpu.memory_space<vmem>>, %arg7: memref<1x64x128xf32, #tpu.memory_space<vmem>>, %arg8: memref<256x128xf32, #tpu.memory_space<vmem>>) attributes {dimension_semantics = [#tpu.dimension_semantics<parallel>], iteration_bounds = array<i64: 2>, scalar_prefetch = 0 : i64, scratch_operands = 1 : i64, tpu.core_type = #tpu.core_type<tc>, window_params = [{transform_indices = @transform_0, window_bounds = array<i64: 1, 256, 36>}, {pipeline_mode = #tpu.pipeline_mode<synchronous>, transform_indices = @transform_1, window_bounds = array<i64: 36, 128>}, {pipeline_mode = #tpu.pipeline_mode<synchronous>, transform_indices = @transform_2, window_bounds = array<i64: 128, 8>}, {pipeline_mode = #tpu.pipeline_mode<synchronous>, transform_indices = @transform_3, window_bounds = array<i64: 1, 8>}, {pipeline_mode = #tpu.pipeline_mode<synchronous>, transform_indices = @transform_4, window_bounds = array<i64: 8, 128>}, {pipeline_mode = #tpu.pipeline_mode<synchronous>, transform_indices = @transform_5, window_bounds = array<i64: 1, 128>}, {transform_indices = @transform_6, window_bounds = array<i64: 1, 64, 128>}]} {
    %c0 = arith.constant 0 : index
    %c0_0 = arith.constant 0 : index
    %c0_1 = arith.constant 0 : index
    %0 = vector.load %arg1[%c0, %c0_0, %c0_1] : memref<1x256x36xbf16, #tpu.memory_space<vmem>>, vector<1x256x36xbf16>
    %1 = vector.shape_cast %0 : vector<1x256x36xbf16> to vector<256x36xbf16>
    %c0_2 = arith.constant 0 : index
    %c0_3 = arith.constant 0 : index
    %2 = vector.load %arg2[%c0_2, %c0_3] : memref<36x128xbf16, #tpu.memory_space<vmem>>, vector<36x128xbf16>
    %cst = arith.constant dense<0.000000e+00> : vector<256x128xf32>
    %3 = tpu.matmul %1, %2, %cst {dimension_numbers = #tpu.dot_dimension_numbers<[1], [0], [0], [1], [0, 0, 1, 1], [], []>} : vector<256x36xbf16>, vector<36x128xbf16>, vector<256x128xf32> -> vector<256x128xf32>
    %cst_4 = arith.constant 1.000000e+00 : f32
    %4 = vector.broadcast %cst_4 : f32 to vector<1x256xf32>
    %cst_5 = arith.constant dense<0.000000e+00> : vector<1x128xf32>
    %5 = tpu.matmul %4, %3, %cst_5 {dimension_numbers = #tpu.dot_dimension_numbers<[1], [0], [0], [1], [0, 0, 1, 1], [], []>} : vector<1x256xf32>, vector<256x128xf32>, vector<1x128xf32> -> vector<1x128xf32>
    %cst_6 = arith.constant 3.906250e-03 : f32
    %6 = vector.broadcast %cst_6 : f32 to vector<1x128xf32>
    %7 = arith.mulf %5, %6 : vector<1x128xf32>
    %c0_7 = arith.constant 0 : index
    %c0_8 = arith.constant 0 : index
    %8 = vector.load %arg8[%c0_7, %c0_8] : memref<256x128xf32, #tpu.memory_space<vmem>>, vector<256x128xf32>
    tpu.vector_store %arg8[%c0_7, %c0_8], %3 {strides = array<i32>} : memref<256x128xf32, #tpu.memory_space<vmem>>, vector<256x128xf32>,
    %9 = arith.truncf %7 : vector<1x128xf32> to vector<1x128xbf16>
    %c0_9 = arith.constant 0 : index
    %c0_10 = arith.constant 0 : index
    %10 = vector.load %arg3[%c0_9, %c0_10] : memref<128x8xbf16, #tpu.memory_space<vmem>>, vector<128x8xbf16>
    %cst_11 = arith.constant dense<0.000000e+00> : vector<1x8xf32>
    %11 = tpu.matmul %9, %10, %cst_11 {dimension_numbers = #tpu.dot_dimension_numbers<[1], [0], [0], [1], [0, 0, 1, 1], [], []>} : vector<1x128xbf16>, vector<128x8xbf16>, vector<1x8xf32> -> vector<1x8xf32>
    %c0_12 = arith.constant 0 : index
    %c0_13 = arith.constant 0 : index
    %12 = vector.load %arg4[%c0_12, %c0_13] : memref<1x8xf32, #tpu.memory_space<vmem>>, vector<1x8xf32>
    %13 = arith.addf %11, %12 : vector<1x8xf32>
    %cst_14 = arith.constant 0.000000e+00 : f32
    %14 = vector.broadcast %cst_14 : f32 to vector<1x8xf32>
    %15 = arith.maximumf %13, %14 : vector<1x8xf32>
    %16 = arith.truncf %15 : vector<1x8xf32> to vector<1x8xbf16>
    %c0_15 = arith.constant 0 : index
    %c0_16 = arith.constant 0 : index
    %17 = vector.load %arg5[%c0_15, %c0_16] : memref<8x128xbf16, #tpu.memory_space<vmem>>, vector<8x128xbf16>
    %cst_17 = arith.constant dense<0.000000e+00> : vector<1x128xf32>
    %18 = tpu.matmul %16, %17, %cst_17 {dimension_numbers = #tpu.dot_dimension_numbers<[1], [0], [0], [1], [0, 0, 1, 1], [], []>} : vector<1x8xbf16>, vector<8x128xbf16>, vector<1x128xf32> -> vector<1x128xf32>
    %c0_18 = arith.constant 0 : index
    %c0_19 = arith.constant 0 : index
    %19 = vector.load %arg6[%c0_18, %c0_19] : memref<1x128xf32, #tpu.memory_space<vmem>>, vector<1x128xf32>
    %20 = arith.addf %18, %19 : vector<1x128xf32>
    %cst_20 = arith.constant 0.000000e+00 : f32
    %21 = vector.broadcast %cst_20 : f32 to vector<1x128xf32>
    %22 = arith.subf %21, %20 : vector<1x128xf32>
    %23 = math.exp %22 : vector<1x128xf32>
    %cst_21 = arith.constant 1.000000e+00 : f32
    %24 = vector.broadcast %cst_21 : f32 to vector<1x128xf32>
    %25 = arith.addf %24, %23 : vector<1x128xf32>
    %cst_22 = arith.constant 1.000000e+00 : f32
    %26 = vector.broadcast %cst_22 : f32 to vector<1x128xf32>
    %27 = arith.divf %26, %25 : vector<1x128xf32>
    %28 = vector.shape_cast %27 : vector<1x128xf32> to vector<1x128xf32>
    %29 = vector.broadcast %28 : vector<1x128xf32> to vector<8x128xf32>
    %30 = tpu.iota {dimensions = array<i32: 0>} : vector<8x128xi32>
    %c1_i32 = arith.constant 1 : i32
    %31 = vector.broadcast %c1_i32 : i32 to vector<8x128xi32>
    %32 = arith.cmpi sge, %30, %31 : vector<8x128xi32>
    %c0_23 = arith.constant 0 : index
    %c0_24 = arith.constant 0 : index
    %33 = tpu.strided_load %arg8[%c0_23, %c0_24] {strides = array<i32: 2, 1>} : memref<256x128xf32, #tpu.memory_space<vmem>>, vector<8x128xf32>
    %c1 = arith.constant 1 : index
    %c0_25 = arith.constant 0 : index
    %34 = tpu.strided_load %arg8[%c1, %c0_25] {strides = array<i32: 2, 1>} : memref<256x128xf32, #tpu.memory_space<vmem>>, vector<8x128xf32>
    %c16 = arith.constant 16 : index
    %c0_26 = arith.constant 0 : index
    %35 = tpu.strided_load %arg8[%c16, %c0_26] {strides = array<i32: 2, 1>} : memref<256x128xf32, #tpu.memory_space<vmem>>, vector<8x128xf32>
    %c17 = arith.constant 17 : index
    %c0_27 = arith.constant 0 : index
    %36 = tpu.strided_load %arg8[%c17, %c0_27] {strides = array<i32: 2, 1>} : memref<256x128xf32, #tpu.memory_space<vmem>>, vector<8x128xf32>
    %37 = arith.maximumf %33, %35 : vector<8x128xf32>
    %38 = arith.maximumf %34, %36 : vector<8x128xf32>
    %c1_i32_28 = arith.constant 1 : i32
    %39 = tpu.dynamic_rotate %38 by %c1_i32_28 dim 0 : vector<8x128xf32>, i32 -> vector<8x128xf32>
    %40 = arith.select %32, %39, %37 : vector<8x128xi1>, vector<8x128xf32>
    %41 = arith.maximumf %37, %38 : vector<8x128xf32>
    %42 = arith.maximumf %41, %40 : vector<8x128xf32>
    %43 = arith.mulf %42, %29 : vector<8x128xf32>
    %c0_29 = arith.constant 0 : index
    %c0_30 = arith.constant 0 : index
    %c0_31 = arith.constant 0 : index
    %44 = vector.load %arg7[%c0_29, %c0_30, %c0_31] : memref<1x64x128xf32, #tpu.memory_space<vmem>>, vector<1x8x128xf32>
    %45 = vector.shape_cast %44 : vector<1x8x128xf32> to vector<8x128xf32>
    %46 = vector.shape_cast %43 : vector<8x128xf32> to vector<1x8x128xf32>
    tpu.vector_store %arg7[%c0_29, %c0_30, %c0_31], %46 {strides = array<i32>} : memref<1x64x128xf32, #tpu.memory_space<vmem>>, vector<1x8x128xf32>,
    %c16_32 = arith.constant 16 : index
    %c0_33 = arith.constant 0 : index
    %47 = tpu.strided_load %arg8[%c16_32, %c0_33] {strides = array<i32: 2, 1>} : memref<256x128xf32, #tpu.memory_space<vmem>>, vector<8x128xf32>
    %c17_34 = arith.constant 17 : index
    %c0_35 = arith.constant 0 : index
    %48 = tpu.strided_load %arg8[%c17_34, %c0_35] {strides = array<i32: 2, 1>} : memref<256x128xf32, #tpu.memory_space<vmem>>, vector<8x128xf32>
    %c32 = arith.constant 32 : index
    %c0_36 = arith.constant 0 : index
    %49 = tpu.strided_load %arg8[%c32, %c0_36] {strides = array<i32: 2, 1>} : memref<256x128xf32, #tpu.memory_space<vmem>>, vector<8x128xf32>
    %c33 = arith.constant 33 : index
    %c0_37 = arith.constant 0 : index
    %50 = tpu.strided_load %arg8[%c33, %c0_37] {strides = array<i32: 2, 1>} : memref<256x128xf32, #tpu.memory_space<vmem>>, vector<8x128xf32>
    %51 = arith.maximumf %47, %49 : vector<8x128xf32>
    %52 = arith.maximumf %48, %50 : vector<8x128xf32>
    %c48 = arith.constant 48 : index
    %c0_38 = arith.constant 0 : index
    %53 = tpu.strided_load %arg8[%c48, %c0_38] {strides = array<i32: 2, 1>} : memref<256x128xf32, #tpu.memory_space<vmem>>, vector<8x128xf32>
    %c49 = arith.constant 49 : index
    %c0_39 = arith.constant 0 : index
    %54 = tpu.strided_load %arg8[%c49, %c0_39] {strides = array<i32: 2, 1>} : memref<256x128xf32, #tpu.memory_space<vmem>>, vector<8x128xf32>
    %55 = arith.maximumf %51, %53 : vector<8x128xf32>
    %56 = arith.maximumf %52, %54 : vector<8x128xf32>
    %c1_i32_40 = arith.constant 1 : i32
    %57 = tpu.dynamic_rotate %56 by %c1_i32_40 dim 0 : vector<8x128xf32>, i32 -> vector<8x128xf32>
    %58 = arith.select %32, %57, %55 : vector<8x128xi1>, vector<8x128xf32>
    %59 = arith.maximumf %55, %56 : vector<8x128xf32>
    %60 = arith.maximumf %59, %58 : vector<8x128xf32>
    %61 = arith.mulf %60, %29 : vector<8x128xf32>
    %c0_41 = arith.constant 0 : index
    %c8 = arith.constant 8 : index
    %c0_42 = arith.constant 0 : index
    %62 = vector.load %arg7[%c0_41, %c8, %c0_42] : memref<1x64x128xf32, #tpu.memory_space<vmem>>, vector<1x8x128xf32>
    %63 = vector.shape_cast %62 : vector<1x8x128xf32> to vector<8x128xf32>
    %64 = vector.shape_cast %61 : vector<8x128xf32> to vector<1x8x128xf32>
    tpu.vector_store %arg7[%c0_41, %c8, %c0_42], %64 {strides = array<i32>} : memref<1x64x128xf32, #tpu.memory_space<vmem>>, vector<1x8x128xf32>,
    %c48_43 = arith.constant 48 : index
    %c0_44 = arith.constant 0 : index
    %65 = tpu.strided_load %arg8[%c48_43, %c0_44] {strides = array<i32: 2, 1>} : memref<256x128xf32, #tpu.memory_space<vmem>>, vector<8x128xf32>
    %c49_45 = arith.constant 49 : index
    %c0_46 = arith.constant 0 : index
    %66 = tpu.strided_load %arg8[%c49_45, %c0_46] {strides = array<i32: 2, 1>} : memref<256x128xf32, #tpu.memory_space<vmem>>, vector<8x128xf32>
    %c64 = arith.constant 64 : index
    %c0_47 = arith.constant 0 : index
    %67 = tpu.strided_load %arg8[%c64, %c0_47] {strides = array<i32: 2, 1>} : memref<256x128xf32, #tpu.memory_space<vmem>>, vector<8x128xf32>
    %c65 = arith.constant 65 : index
    %c0_48 = arith.constant 0 : index
    %68 = tpu.strided_load %arg8[%c65, %c0_48] {strides = array<i32: 2, 1>} : memref<256x128xf32, #tpu.memory_space<vmem>>, vector<8x128xf32>
    %69 = arith.maximumf %65, %67 : vector<8x128xf32>
    %70 = arith.maximumf %66, %68 : vector<8x128xf32>
    %c80 = arith.constant 80 : index
    %c0_49 = arith.constant 0 : index
    %71 = tpu.strided_load %arg8[%c80, %c0_49] {strides = array<i32: 2, 1>} : memref<256x128xf32, #tpu.memory_space<vmem>>, vector<8x128xf32>
    %c81 = arith.constant 81 : index
    %c0_50 = arith.constant 0 : index
    %72 = tpu.strided_load %arg8[%c81, %c0_50] {strides = array<i32: 2, 1>} : memref<256x128xf32, #tpu.memory_space<vmem>>, vector<8x128xf32>
    %73 = arith.maximumf %69, %71 : vector<8x128xf32>
    %74 = arith.maximumf %70, %72 : vector<8x128xf32>
    %c1_i32_51 = arith.constant 1 : i32
    %75 = tpu.dynamic_rotate %74 by %c1_i32_51 dim 0 : vector<8x128xf32>, i32 -> vector<8x128xf32>
    %76 = arith.select %32, %75, %73 : vector<8x128xi1>, vector<8x128xf32>
    %77 = arith.maximumf %73, %74 : vector<8x128xf32>
    %78 = arith.maximumf %77, %76 : vector<8x128xf32>
    %79 = arith.mulf %78, %29 : vector<8x128xf32>
    %c0_52 = arith.constant 0 : index
    %c16_53 = arith.constant 16 : index
    %c0_54 = arith.constant 0 : index
    %80 = vector.load %arg7[%c0_52, %c16_53, %c0_54] : memref<1x64x128xf32, #tpu.memory_space<vmem>>, vector<1x8x128xf32>
    %81 = vector.shape_cast %80 : vector<1x8x128xf32> to vector<8x128xf32>
    %82 = vector.shape_cast %79 : vector<8x128xf32> to vector<1x8x128xf32>
    tpu.vector_store %arg7[%c0_52, %c16_53, %c0_54], %82 {strides = array<i32>} : memref<1x64x128xf32, #tpu.memory_space<vmem>>, vector<1x8x128xf32>,
    %c80_55 = arith.constant 80 : index
    %c0_56 = arith.constant 0 : index
    %83 = tpu.strided_load %arg8[%c80_55, %c0_56] {strides = array<i32: 2, 1>} : memref<256x128xf32, #tpu.memory_space<vmem>>, vector<8x128xf32>
    %c81_57 = arith.constant 81 : index
    %c0_58 = arith.constant 0 : index
    %84 = tpu.strided_load %arg8[%c81_57, %c0_58] {strides = array<i32: 2, 1>} : memref<256x128xf32, #tpu.memory_space<vmem>>, vector<8x128xf32>
    %c96 = arith.constant 96 : index
    %c0_59 = arith.constant 0 : index
    %85 = tpu.strided_load %arg8[%c96, %c0_59] {strides = array<i32: 2, 1>} : memref<256x128xf32, #tpu.memory_space<vmem>>, vector<8x128xf32>
    %c97 = arith.constant 97 : index
    %c0_60 = arith.constant 0 : index
    %86 = tpu.strided_load %arg8[%c97, %c0_60] {strides = array<i32: 2, 1>} : memref<256x128xf32, #tpu.memory_space<vmem>>, vector<8x128xf32>
    %87 = arith.maximumf %83, %85 : vector<8x128xf32>
    %88 = arith.maximumf %84, %86 : vector<8x128xf32>
    %c112 = arith.constant 112 : index
    %c0_61 = arith.constant 0 : index
    %89 = tpu.strided_load %arg8[%c112, %c0_61] {strides = array<i32: 2, 1>} : memref<256x128xf32, #tpu.memory_space<vmem>>, vector<8x128xf32>
    %c113 = arith.constant 113 : index
    %c0_62 = arith.constant 0 : index
    %90 = tpu.strided_load %arg8[%c113, %c0_62] {strides = array<i32: 2, 1>} : memref<256x128xf32, #tpu.memory_space<vmem>>, vector<8x128xf32>
    %91 = arith.maximumf %87, %89 : vector<8x128xf32>
    %92 = arith.maximumf %88, %90 : vector<8x128xf32>
    %c1_i32_63 = arith.constant 1 : i32
    %93 = tpu.dynamic_rotate %92 by %c1_i32_63 dim 0 : vector<8x128xf32>, i32 -> vector<8x128xf32>
    %94 = arith.select %32, %93, %91 : vector<8x128xi1>, vector<8x128xf32>
    %95 = arith.maximumf %91, %92 : vector<8x128xf32>
    %96 = arith.maximumf %95, %94 : vector<8x128xf32>
    %97 = arith.mulf %96, %29 : vector<8x128xf32>
    %c0_64 = arith.constant 0 : index
    %c24 = arith.constant 24 : index
    %c0_65 = arith.constant 0 : index
    %98 = vector.load %arg7[%c0_64, %c24, %c0_65] : memref<1x64x128xf32, #tpu.memory_space<vmem>>, vector<1x8x128xf32>
    %99 = vector.shape_cast %98 : vector<1x8x128xf32> to vector<8x128xf32>
    %100 = vector.shape_cast %97 : vector<8x128xf32> to vector<1x8x128xf32>
    tpu.vector_store %arg7[%c0_64, %c24, %c0_65], %100 {strides = array<i32>} : memref<1x64x128xf32, #tpu.memory_space<vmem>>, vector<1x8x128xf32>,
    %c112_66 = arith.constant 112 : index
    %c0_67 = arith.constant 0 : index
    %101 = tpu.strided_load %arg8[%c112_66, %c0_67] {strides = array<i32: 2, 1>} : memref<256x128xf32, #tpu.memory_space<vmem>>, vector<8x128xf32>
    %c113_68 = arith.constant 113 : index
    %c0_69 = arith.constant 0 : index
    %102 = tpu.strided_load %arg8[%c113_68, %c0_69] {strides = array<i32: 2, 1>} : memref<256x128xf32, #tpu.memory_space<vmem>>, vector<8x128xf32>
    %c128 = arith.constant 128 : index
    %c0_70 = arith.constant 0 : index
    %103 = tpu.strided_load %arg8[%c128, %c0_70] {strides = array<i32: 2, 1>} : memref<256x128xf32, #tpu.memory_space<vmem>>, vector<8x128xf32>
    %c129 = arith.constant 129 : index
    %c0_71 = arith.constant 0 : index
    %104 = tpu.strided_load %arg8[%c129, %c0_71] {strides = array<i32: 2, 1>} : memref<256x128xf32, #tpu.memory_space<vmem>>, vector<8x128xf32>
    %105 = arith.maximumf %101, %103 : vector<8x128xf32>
    %106 = arith.maximumf %102, %104 : vector<8x128xf32>
    %c144 = arith.constant 144 : index
    %c0_72 = arith.constant 0 : index
    %107 = tpu.strided_load %arg8[%c144, %c0_72] {strides = array<i32: 2, 1>} : memref<256x128xf32, #tpu.memory_space<vmem>>, vector<8x128xf32>
    %c145 = arith.constant 145 : index
    %c0_73 = arith.constant 0 : index
    %108 = tpu.strided_load %arg8[%c145, %c0_73] {strides = array<i32: 2, 1>} : memref<256x128xf32, #tpu.memory_space<vmem>>, vector<8x128xf32>
    %109 = arith.maximumf %105, %107 : vector<8x128xf32>
    %110 = arith.maximumf %106, %108 : vector<8x128xf32>
    %c1_i32_74 = arith.constant 1 : i32
    %111 = tpu.dynamic_rotate %110 by %c1_i32_74 dim 0 : vector<8x128xf32>, i32 -> vector<8x128xf32>
    %112 = arith.select %32, %111, %109 : vector<8x128xi1>, vector<8x128xf32>
    %113 = arith.maximumf %109, %110 : vector<8x128xf32>
    %114 = arith.maximumf %113, %112 : vector<8x128xf32>
    %115 = arith.mulf %114, %29 : vector<8x128xf32>
    %c0_75 = arith.constant 0 : index
    %c32_76 = arith.constant 32 : index
    %c0_77 = arith.constant 0 : index
    %116 = vector.load %arg7[%c0_75, %c32_76, %c0_77] : memref<1x64x128xf32, #tpu.memory_space<vmem>>, vector<1x8x128xf32>
    %117 = vector.shape_cast %116 : vector<1x8x128xf32> to vector<8x128xf32>
    %118 = vector.shape_cast %115 : vector<8x128xf32> to vector<1x8x128xf32>
    tpu.vector_store %arg7[%c0_75, %c32_76, %c0_77], %118 {strides = array<i32>} : memref<1x64x128xf32, #tpu.memory_space<vmem>>, vector<1x8x128xf32>,
    %c144_78 = arith.constant 144 : index
    %c0_79 = arith.constant 0 : index
    %119 = tpu.strided_load %arg8[%c144_78, %c0_79] {strides = array<i32: 2, 1>} : memref<256x128xf32, #tpu.memory_space<vmem>>, vector<8x128xf32>
    %c145_80 = arith.constant 145 : index
    %c0_81 = arith.constant 0 : index
    %120 = tpu.strided_load %arg8[%c145_80, %c0_81] {strides = array<i32: 2, 1>} : memref<256x128xf32, #tpu.memory_space<vmem>>, vector<8x128xf32>
    %c160 = arith.constant 160 : index
    %c0_82 = arith.constant 0 : index
    %121 = tpu.strided_load %arg8[%c160, %c0_82] {strides = array<i32: 2, 1>} : memref<256x128xf32, #tpu.memory_space<vmem>>, vector<8x128xf32>
    %c161 = arith.constant 161 : index
    %c0_83 = arith.constant 0 : index
    %122 = tpu.strided_load %arg8[%c161, %c0_83] {strides = array<i32: 2, 1>} : memref<256x128xf32, #tpu.memory_space<vmem>>, vector<8x128xf32>
    %123 = arith.maximumf %119, %121 : vector<8x128xf32>
    %124 = arith.maximumf %120, %122 : vector<8x128xf32>
    %c176 = arith.constant 176 : index
    %c0_84 = arith.constant 0 : index
    %125 = tpu.strided_load %arg8[%c176, %c0_84] {strides = array<i32: 2, 1>} : memref<256x128xf32, #tpu.memory_space<vmem>>, vector<8x128xf32>
    %c177 = arith.constant 177 : index
    %c0_85 = arith.constant 0 : index
    %126 = tpu.strided_load %arg8[%c177, %c0_85] {strides = array<i32: 2, 1>} : memref<256x128xf32, #tpu.memory_space<vmem>>, vector<8x128xf32>
    %127 = arith.maximumf %123, %125 : vector<8x128xf32>
    %128 = arith.maximumf %124, %126 : vector<8x128xf32>
    %c1_i32_86 = arith.constant 1 : i32
    %129 = tpu.dynamic_rotate %128 by %c1_i32_86 dim 0 : vector<8x128xf32>, i32 -> vector<8x128xf32>
    %130 = arith.select %32, %129, %127 : vector<8x128xi1>, vector<8x128xf32>
    %131 = arith.maximumf %127, %128 : vector<8x128xf32>
    %132 = arith.maximumf %131, %130 : vector<8x128xf32>
    %133 = arith.mulf %132, %29 : vector<8x128xf32>
    %c0_87 = arith.constant 0 : index
    %c40 = arith.constant 40 : index
    %c0_88 = arith.constant 0 : index
    %134 = vector.load %arg7[%c0_87, %c40, %c0_88] : memref<1x64x128xf32, #tpu.memory_space<vmem>>, vector<1x8x128xf32>
    %135 = vector.shape_cast %134 : vector<1x8x128xf32> to vector<8x128xf32>
    %136 = vector.shape_cast %133 : vector<8x128xf32> to vector<1x8x128xf32>
    tpu.vector_store %arg7[%c0_87, %c40, %c0_88], %136 {strides = array<i32>} : memref<1x64x128xf32, #tpu.memory_space<vmem>>, vector<1x8x128xf32>,
    %c176_89 = arith.constant 176 : index
    %c0_90 = arith.constant 0 : index
    %137 = tpu.strided_load %arg8[%c176_89, %c0_90] {strides = array<i32: 2, 1>} : memref<256x128xf32, #tpu.memory_space<vmem>>, vector<8x128xf32>
    %c177_91 = arith.constant 177 : index
    %c0_92 = arith.constant 0 : index
    %138 = tpu.strided_load %arg8[%c177_91, %c0_92] {strides = array<i32: 2, 1>} : memref<256x128xf32, #tpu.memory_space<vmem>>, vector<8x128xf32>
    %c192 = arith.constant 192 : index
    %c0_93 = arith.constant 0 : index
    %139 = tpu.strided_load %arg8[%c192, %c0_93] {strides = array<i32: 2, 1>} : memref<256x128xf32, #tpu.memory_space<vmem>>, vector<8x128xf32>
    %c193 = arith.constant 193 : index
    %c0_94 = arith.constant 0 : index
    %140 = tpu.strided_load %arg8[%c193, %c0_94] {strides = array<i32: 2, 1>} : memref<256x128xf32, #tpu.memory_space<vmem>>, vector<8x128xf32>
    %141 = arith.maximumf %137, %139 : vector<8x128xf32>
    %142 = arith.maximumf %138, %140 : vector<8x128xf32>
    %c208 = arith.constant 208 : index
    %c0_95 = arith.constant 0 : index
    %143 = tpu.strided_load %arg8[%c208, %c0_95] {strides = array<i32: 2, 1>} : memref<256x128xf32, #tpu.memory_space<vmem>>, vector<8x128xf32>
    %c209 = arith.constant 209 : index
    %c0_96 = arith.constant 0 : index
    %144 = tpu.strided_load %arg8[%c209, %c0_96] {strides = array<i32: 2, 1>} : memref<256x128xf32, #tpu.memory_space<vmem>>, vector<8x128xf32>
    %145 = arith.maximumf %141, %143 : vector<8x128xf32>
    %146 = arith.maximumf %142, %144 : vector<8x128xf32>
    %c1_i32_97 = arith.constant 1 : i32
    %147 = tpu.dynamic_rotate %146 by %c1_i32_97 dim 0 : vector<8x128xf32>, i32 -> vector<8x128xf32>
    %148 = arith.select %32, %147, %145 : vector<8x128xi1>, vector<8x128xf32>
    %149 = arith.maximumf %145, %146 : vector<8x128xf32>
    %150 = arith.maximumf %149, %148 : vector<8x128xf32>
    %151 = arith.mulf %150, %29 : vector<8x128xf32>
    %c0_98 = arith.constant 0 : index
    %c48_99 = arith.constant 48 : index
    %c0_100 = arith.constant 0 : index
    %152 = vector.load %arg7[%c0_98, %c48_99, %c0_100] : memref<1x64x128xf32, #tpu.memory_space<vmem>>, vector<1x8x128xf32>
    %153 = vector.shape_cast %152 : vector<1x8x128xf32> to vector<8x128xf32>
    %154 = vector.shape_cast %151 : vector<8x128xf32> to vector<1x8x128xf32>
    tpu.vector_store %arg7[%c0_98, %c48_99, %c0_100], %154 {strides = array<i32>} : memref<1x64x128xf32, #tpu.memory_space<vmem>>, vector<1x8x128xf32>,
    %c208_101 = arith.constant 208 : index
    %c0_102 = arith.constant 0 : index
    %155 = tpu.strided_load %arg8[%c208_101, %c0_102] {strides = array<i32: 2, 1>} : memref<256x128xf32, #tpu.memory_space<vmem>>, vector<8x128xf32>
    %c209_103 = arith.constant 209 : index
    %c0_104 = arith.constant 0 : index
    %156 = tpu.strided_load %arg8[%c209_103, %c0_104] {strides = array<i32: 2, 1>} : memref<256x128xf32, #tpu.memory_space<vmem>>, vector<8x128xf32>
    %c224 = arith.constant 224 : index
    %c0_105 = arith.constant 0 : index
    %157 = tpu.strided_load %arg8[%c224, %c0_105] {strides = array<i32: 2, 1>} : memref<256x128xf32, #tpu.memory_space<vmem>>, vector<8x128xf32>
    %c225 = arith.constant 225 : index
    %c0_106 = arith.constant 0 : index
    %158 = tpu.strided_load %arg8[%c225, %c0_106] {strides = array<i32: 2, 1>} : memref<256x128xf32, #tpu.memory_space<vmem>>, vector<8x128xf32>
    %159 = arith.maximumf %155, %157 : vector<8x128xf32>
    %160 = arith.maximumf %156, %158 : vector<8x128xf32>
    %c240 = arith.constant 240 : index
    %c0_107 = arith.constant 0 : index
    %161 = tpu.strided_load %arg8[%c240, %c0_107] {strides = array<i32: 2, 1>} : memref<256x128xf32, #tpu.memory_space<vmem>>, vector<8x128xf32>
    %c241 = arith.constant 241 : index
    %c0_108 = arith.constant 0 : index
    %162 = tpu.strided_load %arg8[%c241, %c0_108] {strides = array<i32: 2, 1>} : memref<256x128xf32, #tpu.memory_space<vmem>>, vector<8x128xf32>
    %163 = arith.maximumf %159, %161 : vector<8x128xf32>
    %164 = arith.maximumf %160, %162 : vector<8x128xf32>
    %c1_i32_109 = arith.constant 1 : i32
    %165 = tpu.dynamic_rotate %164 by %c1_i32_109 dim 0 : vector<8x128xf32>, i32 -> vector<8x128xf32>
    %166 = arith.select %32, %165, %163 : vector<8x128xi1>, vector<8x128xf32>
    %167 = arith.maximumf %163, %164 : vector<8x128xf32>
    %168 = arith.maximumf %167, %166 : vector<8x128xf32>
    %169 = arith.mulf %168, %29 : vector<8x128xf32>
    %c0_110 = arith.constant 0 : index
    %c56 = arith.constant 56 : index
    %c0_111 = arith.constant 0 : index
    %170 = vector.load %arg7[%c0_110, %c56, %c0_111] : memref<1x64x128xf32, #tpu.memory_space<vmem>>, vector<1x8x128xf32>
    %171 = vector.shape_cast %170 : vector<1x8x128xf32> to vector<8x128xf32>
    %172 = vector.shape_cast %169 : vector<8x128xf32> to vector<1x8x128xf32>
    tpu.vector_store %arg7[%c0_110, %c56, %c0_111], %172 {strides = array<i32>} : memref<1x64x128xf32, #tpu.memory_space<vmem>>, vector<1x8x128xf32>,
    return
  }
  func.func @transform_0(%arg0: i32) -> (i32, i32, i32) {
    %c0_i32 = arith.constant 0 : i32
    %c0_i32_0 = arith.constant 0 : i32
    %c0_i32_1 = arith.constant 0 : i32
    return %arg0, %c0_i32, %c0_i32_0 : i32, i32, i32
  }
  func.func @transform_1(%arg0: i32) -> (i32, i32) {
    %c0_i32 = arith.constant 0 : i32
    %c0_i32_0 = arith.constant 0 : i32
    %c0_i32_1 = arith.constant 0 : i32
    return %c0_i32, %c0_i32_0 : i32, i32
  }
  func.func @transform_2(%arg0: i32) -> (i32, i32) {
    %c0_i32 = arith.constant 0 : i32
    %c0_i32_0 = arith.constant 0 : i32
    %c0_i32_1 = arith.constant 0 : i32
    return %c0_i32, %c0_i32_0 : i32, i32
  }
  func.func @transform_3(%arg0: i32) -> (i32, i32) {
    %c0_i32 = arith.constant 0 : i32
    %c0_i32_0 = arith.constant 0 : i32
    %c0_i32_1 = arith.constant 0 : i32
    return %c0_i32, %c0_i32_0 : i32, i32
  }
  func.func @transform_4(%arg0: i32) -> (i32, i32) {
    %c0_i32 = arith.constant 0 : i32
    %c0_i32_0 = arith.constant 0 : i32
    %c0_i32_1 = arith.constant 0 : i32
    return %c0_i32, %c0_i32_0 : i32, i32
  }
  func.func @transform_5(%arg0: i32) -> (i32, i32) {
    %c0_i32 = arith.constant 0 : i32
    %c0_i32_0 = arith.constant 0 : i32
    %c0_i32_1 = arith.constant 0 : i32
    return %c0_i32, %c0_i32_0 : i32, i32
  }
  func.func @transform_6(%arg0: i32) -> (i32, i32, i32) {
    %c0_i32 = arith.constant 0 : i32
    %c0_i32_0 = arith.constant 0 : i32
    %c0_i32_1 = arith.constant 0 : i32
    return %arg0, %c0_i32, %c0_i32_0 : i32, i32, i32
  }
}

</mosaic_0001>

<llo_original>
// kernel: tokenizer_se_forward.1
$region0: #{tokenizer_se_forward.1}
  #allocation0 [shape = 'u32[]', space=smem, size = 0x4, offset = 0x4, fixed_abs, tag = 'smem constant byte address 0x4 - core index']
  #allocation1 [shape = 'u32[144,128]{1,0:T(1,128)}', space=vmem, size = 0x12000, scoped, tag = 'internal scratch']
  #allocation2 [shape = 'f32[256,128]{1,0:T(8,128)}', space=vmem, size = 0x20000, scoped, tag = 'scratch operand']
  %s0 = inlined_call_operand.vmem [shape: bf16[2,256,36], index: 0, kind: input, shape index: {}]
  %s1 = inlined_call_operand.vmem [shape: bf16[36,128], index: 1, kind: input, shape index: {}]
  %s2 = inlined_call_operand.vmem [shape: bf16[128,8], index: 2, kind: input, shape index: {}]
  %s3 = inlined_call_operand.vmem [shape: f32[1,8], index: 3, kind: input, shape index: {}]
  %s4 = inlined_call_operand.vmem [shape: bf16[8,128], index: 4, kind: input, shape index: {}]
  %s5 = inlined_call_operand.vmem [shape: f32[1,128], index: 5, kind: input, shape index: {}]
  %s6 = inlined_call_operand.vmem [shape: f32[2,64,128], index: 6, kind: output, shape index: {}]
  %s7 = sld [smem:[#allocation0]]
  $region57: #{tokenizer_se_forward.1} parent=0
    _
  %s9 = ssub.s32 1, %s7
  %s10 = scalar_select 0, %s9, %s7
  loop: start=0, step=1, limit=4
  $region2: #{tokenizer_se_forward.1} parent=0 // loop_pre_header
    _
  $region3: #{tokenizer_se_forward.1} parent=0 // loop_header
    %s12 = sphi 0, %s16
    %p13 = scmp.ge.s32.totalorder %s12, 4
    %s22 = sphi 0, %s24
    %s25 = sphi 0, %s22
    %s26 = sphi 0, %s25
    %s42 = sphi 0, %s26
    %s46 = sphi 0, %s46
    %s48 = sphi 0, %s46
    %s49 = sphi 0, %s48
    %s63 = sphi 0, %s49
    %s67 = sphi 0, %s67
    %s69 = sphi 0, %s67
    %s70 = sphi 0, %s69
    %s84 = sphi 0, %s70
    %s88 = sphi 0, %s88
    %s90 = sphi 0, %s88
    %s91 = sphi 0, %s90
    %s105 = sphi 0, %s91
    %s109 = sphi 0, %s109
    %s111 = sphi 0, %s109
    %s112 = sphi 0, %s111
    %s126 = sphi 0, %s112
    %s130 = sphi 0, %s130
    %s132 = sphi 0, %s130
    %s133 = sphi 0, %s132
    %s147 = sphi 0, %s133
    %s153 = sphi 0, %s155
    %s156 = sphi 0, %s153
    %s157 = sphi 0, %s156
    %s173 = sphi 0, %s157
  $region4: #{tokenizer_se_forward.1} parent=0 // loop_header_branch
    %15 = sbr.rel (%p13) target = $region8
  $region5: #{tokenizer_se_forward.1} parent=0 // loop_body
    %s17 = ssub.s32 %s12, 1
    %s18 = ssub.s32 %s12, 2
    %s19 = sadd.s32 %s12, 1
    %s20 = ssub.s32 %s12, %s19
    %p21 = scmp.eq.s32.totalorder %s20, 0
    %s23 = sadd.s32 %s22, 1
    %s24 = scalar_select %p21, %s22, %s23
    %p27 = pneg %p21
    %p28 = scmp.eq.s32.totalorder %s12, 1
    %p29 = por %p27, %p28
    %p30 = scmp.ne.s32.totalorder %s22, %s25
    %p31 = scmp.eq.s32.totalorder %s12, 0
    %p32 = por %p30, %p31
    %p33 = scmp.ne.s32.totalorder %s22, %s25
    %p34 = scmp.eq.s32.totalorder %s17, 1
    %p35 = por %p33, %p34
    %p36 = scmp.ne.s32.totalorder %s25, %s26
    %p37 = scmp.eq.s32.totalorder %s17, 0
    %p38 = por %p36, %p37
    %p39 = scmp.ne.s32.totalorder %s25, %s26
    %p40 = scmp.eq.s32.totalorder %s18, 1
    %p41 = por %p39, %p40
    %p43 = scmp.ne.s32.totalorder %s26, %s42
    %p44 = scmp.eq.s32.totalorder %s18, 0
    %p45 = por %p43, %p44
    %s47 = sadd.s32 %s46, 1
    %p50 = scmp.eq.s32.totalorder %s12, 1
    %p51 = scmp.ne.s32.totalorder %s46, %s48
    %p52 = scmp.eq.s32.totalorder %s12, 0
    %p53 = por %p51, %p52
    %p54 = scmp.ne.s32.totalorder %s46, %s48
    %p55 = scmp.eq.s32.totalorder %s17, 1
    %p56 = por %p54, %p55
    %p57 = scmp.ne.s32.totalorder %s48, %s49
    %p58 = scmp.eq.s32.totalorder %s17, 0
    %p59 = por %p57, %p58
    %p60 = scmp.ne.s32.totalorder %s48, %s49
    %p61 = scmp.eq.s32.totalorder %s18, 1
    %p62 = por %p60, %p61
    %p64 = scmp.ne.s32.totalorder %s49, %s63
    %p65 = scmp.eq.s32.totalorder %s18, 0
    %p66 = por %p64, %p65
    %s68 = sadd.s32 %s67, 1
    %p71 = scmp.eq.s32.totalorder %s12, 1
    %p72 = scmp.ne.s32.totalorder %s67, %s69
    %p73 = scmp.eq.s32.totalorder %s12, 0
    %p74 = por %p72, %p73
    %p75 = scmp.ne.s32.totalorder %s67, %s69
    %p76 = scmp.eq.s32.totalorder %s17, 1
    %p77 = por %p75, %p76
    %p78 = scmp.ne.s32.totalorder %s69, %s70
    %p79 = scmp.eq.s32.totalorder %s17, 0
    %p80 = por %p78, %p79
    %p81 = scmp.ne.s32.totalorder %s69, %s70
    %p82 = scmp.eq.s32.totalorder %s18, 1
    %p83 = por %p81, %p82
    %p85 = scmp.ne.s32.totalorder %s70, %s84
    %p86 = scmp.eq.s32.totalorder %s18, 0
    %p87 = por %p85, %p86
    %s89 = sadd.s32 %s88, 1
    %p92 = scmp.eq.s32.totalorder %s12, 1
    %p93 = scmp.ne.s32.totalorder %s88, %s90
    %p94 = scmp.eq.s32.totalorder %s12, 0
    %p95 = por %p93, %p94
    %p96 = scmp.ne.s32.totalorder %s88, %s90
    %p97 = scmp.eq.s32.totalorder %s17, 1
    %p98 = por %p96, %p97
    %p99 = scmp.ne.s32.totalorder %s90, %s91
    %p100 = scmp.eq.s32.totalorder %s17, 0
    %p101 = por %p99, %p100
    %p102 = scmp.ne.s32.totalorder %s90, %s91
    %p103 = scmp.eq.s32.totalorder %s18, 1
    %p104 = por %p102, %p103
    %p106 = scmp.ne.s32.totalorder %s91, %s105
    %p107 = scmp.eq.s32.totalorder %s18, 0
    %p108 = por %p106, %p107
    %s110 = sadd.s32 %s109, 1
    %p113 = scmp.eq.s32.totalorder %s12, 1
    %p114 = scmp.ne.s32.totalorder %s109, %s111
    %p115 = scmp.eq.s32.totalorder %s12, 0
    %p116 = por %p114, %p115
    %p117 = scmp.ne.s32.totalorder %s109, %s111
    %p118 = scmp.eq.s32.totalorder %s17, 1
    %p119 = por %p117, %p118
    %p120 = scmp.ne.s32.totalorder %s111, %s112
    %p121 = scmp.eq.s32.totalorder %s17, 0
    %p122 = por %p120, %p121
    %p123 = scmp.ne.s32.totalorder %s111, %s112
    %p124 = scmp.eq.s32.totalorder %s18, 1
    %p125 = por %p123, %p124
    %p127 = scmp.ne.s32.totalorder %s112, %s126
    %p128 = scmp.eq.s32.totalorder %s18, 0
    %p129 = por %p127, %p128
    %s131 = sadd.s32 %s130, 1
    %p134 = scmp.eq.s32.totalorder %s12, 1
    %p135 = scmp.ne.s32.totalorder %s130, %s132
    %p136 = scmp.eq.s32.totalorder %s12, 0
    %p137 = por %p135, %p136
    %p138 = scmp.ne.s32.totalorder %s130, %s132
    %p139 = scmp.eq.s32.totalorder %s17, 1
    %p140 = por %p138, %p139
    %p141 = scmp.ne.s32.totalorder %s132, %s133
    %p142 = scmp.eq.s32.totalorder %s17, 0
    %p143 = por %p141, %p142
    %p144 = scmp.ne.s32.totalorder %s132, %s133
    %p145 = scmp.eq.s32.totalorder %s18, 1
    %p146 = por %p144, %p145
    %p148 = scmp.ne.s32.totalorder %s133, %s147
    %p149 = scmp.eq.s32.totalorder %s18, 0
    %p150 = por %p148, %p149
    %s151 = ssub.s32 %s12, %s19
    %p152 = scmp.eq.s32.totalorder %s151, 0
    %s154 = sadd.s32 %s153, 1
    %s155 = scalar_select %p152, %s153, %s154
    %p158 = pneg %p152
    %p159 = scmp.eq.s32.totalorder %s12, 1
    %p160 = por %p158, %p159
    %p161 = scmp.ne.s32.totalorder %s153, %s156
    %p162 = scmp.eq.s32.totalorder %s12, 0
    %p163 = por %p161, %p162
    %p164 = scmp.ne.s32.totalorder %s153, %s156
    %p165 = scmp.eq.s32.totalorder %s17, 1
    %p166 = por %p164, %p165
    %p167 = scmp.ne.s32.totalorder %s156, %s157
    %p168 = scmp.eq.s32.totalorder %s17, 0
    %p169 = por %p167, %p168
    %p170 = scmp.ne.s32.totalorder %s156, %s157
    %p171 = scmp.eq.s32.totalorder %s18, 1
    %p172 = por %p170, %p171
    %p174 = scmp.ne.s32.totalorder %s157, %s173
    %p175 = scmp.eq.s32.totalorder %s18, 0
    %p176 = por %p174, %p175
    %p177 = scmp.le.s32.totalorder 1, %s12
    %p178 = scmp.lt.s32.totalorder %s12, 3
    %p179 = pnand %p177, %p178
    %p180 = pneg %p179
    // Predicated region
    $region9: #{tokenizer_se_forward.1} parent=5 // pred_check
      _
    $region10: #{tokenizer_se_forward.1} parent=5 // pred_check_branch
      %182 = sbr.rel (%p179) target = $region12
    $region11: #{tokenizer_se_forward.1} parent=5 // pred_region
      %s183 = ssub.s32 %s12, 1
      // Predicated region
      $region13: #{tokenizer_se_forward.1} parent=11 // pred_check
        %p184 = pneg %p59
      $region14: #{tokenizer_se_forward.1} parent=11 // pred_check_branch
        %186 = sbr.rel (%p184) target = $region16
      $region15: #{tokenizer_se_forward.1} parent=11 // pred_region
        _
      $region16: #{tokenizer_se_forward.1} parent=11 // pred_fallthru
        _
      // Predicated region
      $region17: #{tokenizer_se_forward.1} parent=11 // pred_check
        %p187 = pneg %p80
      $region18: #{tokenizer_se_forward.1} parent=11 // pred_check_branch
        %189 = sbr.rel (%p187) target = $region20
      $region19: #{tokenizer_se_forward.1} parent=11 // pred_region
        _
      $region20: #{tokenizer_se_forward.1} parent=11 // pred_fallthru
        _
      // Predicated region
      $region21: #{tokenizer_se_forward.1} parent=11 // pred_check
        %p190 = pneg %p101
      $region22: #{tokenizer_se_forward.1} parent=11 // pred_check_branch
        %192 = sbr.rel (%p190) target = $region24
      $region23: #{tokenizer_se_forward.1} parent=11 // pred_region
        _
      $region24: #{tokenizer_se_forward.1} parent=11 // pred_fallthru
        _
      // Predicated region
      $region25: #{tokenizer_se_forward.1} parent=11 // pred_check
        %p193 = pneg %p122
      $region26: #{tokenizer_se_forward.1} parent=11 // pred_check_branch
        %195 = sbr.rel (%p193) target = $region28
      $region27: #{tokenizer_se_forward.1} parent=11 // pred_region
        _
      $region28: #{tokenizer_se_forward.1} parent=11 // pred_fallthru
        _
      // Predicated region
      $region29: #{tokenizer_se_forward.1} parent=11 // pred_check
        %p196 = pneg %p143
      $region30: #{tokenizer_se_forward.1} parent=11 // pred_check_branch
        %198 = sbr.rel (%p196) target = $region32
      $region31: #{tokenizer_se_forward.1} parent=11 // pred_region
        _
      $region32: #{tokenizer_se_forward.1} parent=11 // pred_fallthru
        _
    $region12: #{tokenizer_se_forward.1} parent=5 // pred_fallthru
      _
    %p199 = scmp.lt.s32.totalorder %s12, 2
    // Predicated region
    $region33: #{tokenizer_se_forward.1} parent=5 // pred_check
      %p200 = pneg %p199
    $region34: #{tokenizer_se_forward.1} parent=5 // pred_check_branch
      %202 = sbr.rel (%p200) target = $region36
    $region35: #{tokenizer_se_forward.1} parent=5 // pred_region
      // Predicated region
      $region37: #{tokenizer_se_forward.1} parent=35 // pred_check
        %p203 = pneg %p32
      $region38: #{tokenizer_se_forward.1} parent=35 // pred_check_branch
        %205 = sbr.rel (%p203) target = $region40
      $region39: #{tokenizer_se_forward.1} parent=35 // pred_region
        %p206 = scmp.lt.s32.totalorder %s12, 1
        %s207 = scalar_select %p206, %s12, 1
        %s208 = smul.addr %s207, 32
        %s209 = smul.addr %s208, 4
        %s210 = scalar_lea.vmem %s0, %s209
      $region40: #{tokenizer_se_forward.1} parent=35 // pred_fallthru
        _
    $region36: #{tokenizer_se_forward.1} parent=5 // pred_fallthru
      _
    %p211 = scmp.le.s32.totalorder 1, %s12
    %p212 = scmp.lt.s32.totalorder %s12, 3
    %p213 = pnand %p211, %p212
    %p214 = pneg %p213
    // Predicated region
    $region41: #{tokenizer_se_forward.1} parent=5 // pred_check
      _
    $region42: #{tokenizer_se_forward.1} parent=5 // pred_check_branch
      %216 = sbr.rel (%p213) target = $region44
    $region43: #{tokenizer_se_forward.1} parent=5 // pred_region
      %s217 = ssub.s32 %s12, 1
      %p218 = scmp.lt.s32.totalorder %s17, 1
      %s219 = scalar_select %p218, %s17, 1
      %s220 = smul.addr %s219, 32
      %s221 = smul.addr %s220, 4
      %s222 = scalar_lea.vmem %s0, %s221
      %p223 = pneg %p38
      %p224 = pneg %p35
      %p225 = pneg %p59
      %p226 = pneg %p56
      %p227 = pneg %p80
      %p228 = pneg %p77
      %p229 = pneg %p101
      %p230 = pneg %p98
      %p231 = pneg %p122
      %p232 = pneg %p119
      %p233 = pneg %p143
      %p234 = pneg %p140
      %p235 = pneg %p169
      %p236 = pneg %p166
      %p237 = scmp.lt.s32.totalorder %s17, 1
      %s238 = scalar_select %p237, %s17, 1
      %s239 = smul.addr %s238, 8
      %s240 = smul.addr %s239, 8
      %s241 = scalar_lea.vmem %s6, %s240
      %p242 = scmp.lt.s32.totalorder %s17, 1
      %s243 = scalar_select %p242, %s17, 1
      %s244 = smul.addr %s243, 32
      %s245 = smul.addr %s244, 4
      %s246 = scalar_lea.vmem %s0, %s245
      %p247 = scmp.lt.s32.totalorder %s17, 1
      %s248 = scalar_select %p247, %s17, 1
      %s249 = smul.addr %s248, 8
      %s250 = smul.addr %s249, 8
      %s251 = scalar_lea.vmem %s6, %s250
      %v253 = vld [vmem:[%s246] sm:$0xf]
      %v254 = vld [vmem:[%s246 + $0x4] sm:$0xf]
      %v255 = vld [vmem:[%s246 + $0x8] sm:$0xf]
      %v256 = vld [vmem:[%s246 + $0xc] sm:$0xf]
      %v257 = vld [vmem:[%s246 + $0x10] sm:$0xf]
      %v258 = vld [vmem:[%s246 + $0x14] sm:$0xf]
      %v259 = vld [vmem:[%s246 + $0x18] sm:$0xf]
      %v260 = vld [vmem:[%s246 + $0x1c] sm:$0xf]
      %v261 = vld [vmem:[%s246 + $0x20] sm:$0xf]
      %v262 = vld [vmem:[%s246 + $0x24] sm:$0xf]
      %v263 = vld [vmem:[%s246 + $0x28] sm:$0xf]
      %v264 = vld [vmem:[%s246 + $0x2c] sm:$0xf]
      %v265 = vld [vmem:[%s246 + $0x30] sm:$0xf]
      %v266 = vld [vmem:[%s246 + $0x34] sm:$0xf]
      %v267 = vld [vmem:[%s246 + $0x38] sm:$0xf]
      %v268 = vld [vmem:[%s246 + $0x3c] sm:$0xf]
      %v269 = vld [vmem:[%s246 + $0x40] sm:$0xf]
      %v270 = vld [vmem:[%s246 + $0x44] sm:$0xf]
      %v271 = vld [vmem:[%s246 + $0x48] sm:$0xf]
      %v272 = vld [vmem:[%s246 + $0x4c] sm:$0xf]
      %v273 = vld [vmem:[%s246 + $0x50] sm:$0xf]
      %v274 = vld [vmem:[%s246 + $0x54] sm:$0xf]
      %v275 = vld [vmem:[%s246 + $0x58] sm:$0xf]
      %v276 = vld [vmem:[%s246 + $0x5c] sm:$0xf]
      %v277 = vld [vmem:[%s246 + $0x60] sm:$0xf]
      %v278 = vld [vmem:[%s246 + $0x64] sm:$0xf]
      %v279 = vld [vmem:[%s246 + $0x68] sm:$0xf]
      %v280 = vld [vmem:[%s246 + $0x6c] sm:$0xf]
      %v281 = vld [vmem:[%s246 + $0x70] sm:$0xf]
      %v282 = vld [vmem:[%s246 + $0x74] sm:$0xf]
      %v283 = vld [vmem:[%s246 + $0x78] sm:$0xf]
      %v284 = vld [vmem:[%s246 + $0x7c] sm:$0xf]
      %v285 = vld [vmem:[%s1] sm:$0xf]
      %v286 = vld [vmem:[%s1 + $0x4] sm:$0xf]
      %v287 = vld [vmem:[%s1 + $0x8] sm:$0xf]
      %v288 = vld [vmem:[%s1 + $0xc] sm:$0xf]
      %v289 = vld [vmem:[%s1 + $0x10] sm:$0x3]
      %v322 = vunpack.c.l.b16 %v253
      %v323 = vunpack.c.l.b16 %v254
      %v324 = vunpack.c.l.b16 %v255
      %v325 = vunpack.c.l.b16 %v256
      %v326 = vunpack.c.l.b16 %v257
      %v327 = vunpack.c.l.b16 %v258
      %v328 = vunpack.c.l.b16 %v259
      %v329 = vunpack.c.l.b16 %v260
      %v330 = vunpack.c.l.b16 %v261
      %v331 = vunpack.c.l.b16 %v262
      %v332 = vunpack.c.l.b16 %v263
      %v333 = vunpack.c.l.b16 %v264
      %v334 = vunpack.c.l.b16 %v265
      %v335 = vunpack.c.l.b16 %v266
      %v336 = vunpack.c.l.b16 %v267
      %v337 = vunpack.c.l.b16 %v268
      %v338 = vunpack.c.l.b16 %v269
      %v339 = vunpack.c.l.b16 %v270
      %v340 = vunpack.c.l.b16 %v271
      %v341 = vunpack.c.l.b16 %v272
      %v342 = vunpack.c.l.b16 %v273
      %v343 = vunpack.c.l.b16 %v274
      %v344 = vunpack.c.l.b16 %v275
      %v345 = vunpack.c.l.b16 %v276
      %v346 = vunpack.c.l.b16 %v277
      %v347 = vunpack.c.l.b16 %v278
      %v348 = vunpack.c.l.b16 %v279
      %v349 = vunpack.c.l.b16 %v280
      %v350 = vunpack.c.l.b16 %v281
      %v351 = vunpack.c.l.b16 %v282
      %v352 = vunpack.c.l.b16 %v283
      %v353 = vunpack.c.l.b16 %v284
      %v354 = vpack.c.b16 %v323, %v322
      %v355 = vpack.c.b16 %v325, %v324
      %v356 = vpack.c.b16 %v327, %v326
      %v357 = vpack.c.b16 %v329, %v328
      %v358 = vpack.c.b16 %v331, %v330
      %v359 = vpack.c.b16 %v333, %v332
      %v360 = vpack.c.b16 %v335, %v334
      %v361 = vpack.c.b16 %v337, %v336
      %v362 = vpack.c.b16 %v339, %v338
      %v363 = vpack.c.b16 %v341, %v340
      %v364 = vpack.c.b16 %v343, %v342
      %v365 = vpack.c.b16 %v345, %v344
      %v366 = vpack.c.b16 %v347, %v346
      %v367 = vpack.c.b16 %v349, %v348
      %v368 = vpack.c.b16 %v351, %v350
      %v369 = vpack.c.b16 %v353, %v352
      %v375 = vunpack.c.l.b16 %v285
      %v376 = vunpack.c.l.b16 %v286
      %v377 = vunpack.c.l.b16 %v287
      %v378 = vunpack.c.l.b16 %v288
      %v379 = vunpack.c.l.b16 %v289
      %v380 = vpack.c.b16 %v376, %v375
      %v381 = vpack.c.b16 %v378, %v377
      %v382 = vpack.c.b16 %v379, %v379
      %vm385 = vcmask 293888
      %v387 = vsel %vm385, %v354, 0
      %v390 = vsel %vm385, %v355, 0
      %v393 = vsel %vm385, %v356, 0
      %v396 = vsel %vm385, %v357, 0
      %v399 = vsel %vm385, %v358, 0
      %v402 = vsel %vm385, %v359, 0
      %v405 = vsel %vm385, %v360, 0
      %v408 = vsel %vm385, %v361, 0
      %v411 = vsel %vm385, %v362, 0
      %v414 = vsel %vm385, %v363, 0
      %v417 = vsel %vm385, %v364, 0
      %v420 = vsel %vm385, %v365, 0
      %v423 = vsel %vm385, %v366, 0
      %v426 = vsel %vm385, %v367, 0
      %v429 = vsel %vm385, %v368, 0
      %v432 = vsel %vm385, %v369, 0
      %vm434 = vcmask 1041408
      %v436 = vsel %vm434, %v382, 0
      %438 = vmatprep.subr.bf16.mxu0 0
      %439 = vmatpush1.bf16.msra.mxu0 %v380
      %440 = vmatprep.subr.bf16.mxu0 0
      %441 = vmatpush1.bf16.msra.mxu0 %v381
      %442 = vmatprep.subr.bf16.mxu0 0
      %443 = vmatpush1.bf16.msra.mxu0 %v436
      %444 = vmatprep.subr.bf16.mxu0 0
      %445 = vmatpush1.bf16.msra.mxu0 0
      %446 = vmatprep.subr.bf16.mxu0 0
      %447 = vmatpush1.bf16.msra.mxu0 0
      %448 = vmatprep.subr.bf16.mxu0 0
      %449 = vmatpush1.bf16.msra.mxu0 0
      %450 = vmatprep.subr.bf16.mxu0 0
      %451 = vmatpush1.bf16.msra.mxu0 0
      %452 = vmatprep.subr.bf16.mxu0 0
      %453 = vmatpush1.bf16.msra.mxu0 0
      %454 = vmatprep.subr.bf16.mxu0 0
      %455 = vmatpush1.bf16.msra.mxu0 0
      %456 = vmatprep.subr.bf16.mxu0 0
      %457 = vmatpush1.bf16.msra.mxu0 0
      %458 = vmatprep.subr.bf16.mxu0 0
      %459 = vmatpush1.bf16.msra.mxu0 0
      %460 = vmatprep.subr.bf16.mxu0 0
      %461 = vmatpush1.bf16.msra.mxu0 0
      %462 = vmatprep.subr.bf16.mxu0 0
      %463 = vmatpush1.bf16.msra.mxu0 0
      %464 = vmatprep.subr.bf16.mxu0 0
      %465 = vmatpush1.bf16.msra.mxu0 0
      %466 = vmatprep.subr.bf16.mxu0 0
      %467 = vmatpush1.bf16.msra.mxu0 0
      %468 = vmatprep.subr.bf16.mxu0 0
      %469 = vmatpush1.bf16.msra.mxu0 0
      %470 = vmatprep.mubr.bf16.mxu0 0
      %471 = vmatmul.mubr.bf16.gmra.mrb[0].mxu0 %v387
      %v472 = vpop.f32.mrb[0].mxu0
      %v473 = vadd.f32 0.0, %v472
      %v474 = vpop.f32.mrb[0].mxu0
      %v475 = vpop.f32.mrb[0].mxu0
      %v476 = vadd.f32 0.0, %v475
      %v477 = vpop.f32.mrb[0].mxu0
      %478 = vmatprep.mubr.bf16.mxu0 0
      %479 = vmatmul.mubr.bf16.gmra.mrb[0].mxu0 %v390
      %v480 = vpop.f32.mrb[0].mxu0
      %v481 = vadd.f32 0.0, %v480
      %v482 = vpop.f32.mrb[0].mxu0
      %v483 = vpop.f32.mrb[0].mxu0
      %v484 = vadd.f32 0.0, %v483
      %v485 = vpop.f32.mrb[0].mxu0
      %486 = vmatprep.mubr.bf16.mxu0 0
      %487 = vmatmul.mubr.bf16.gmra.mrb[0].mxu0 %v393
      %v488 = vpop.f32.mrb[0].mxu0
      %v489 = vadd.f32 0.0, %v488
      %v490 = vpop.f32.mrb[0].mxu0
      %v491 = vpop.f32.mrb[0].mxu0
      %v492 = vadd.f32 0.0, %v491
      %v493 = vpop.f32.mrb[0].mxu0
      %494 = vmatprep.mubr.bf16.mxu0 0
      %495 = vmatmul.mubr.bf16.gmra.mrb[0].mxu0 %v396
      %v496 = vpop.f32.mrb[0].mxu0
      %v497 = vadd.f32 0.0, %v496
      %v498 = vpop.f32.mrb[0].mxu0
      %v499 = vpop.f32.mrb[0].mxu0
      %v500 = vadd.f32 0.0, %v499
      %v501 = vpop.f32.mrb[0].mxu0
      %502 = vmatprep.mubr.bf16.mxu0 0
      %503 = vmatmul.mubr.bf16.gmra.mrb[0].mxu0 %v399
      %v504 = vpop.f32.mrb[0].mxu0
      %v505 = vadd.f32 0.0, %v504
      %v506 = vpop.f32.mrb[0].mxu0
      %v507 = vpop.f32.mrb[0].mxu0
      %v508 = vadd.f32 0.0, %v507
      %v509 = vpop.f32.mrb[0].mxu0
      %510 = vmatprep.mubr.bf16.mxu0 0
      %511 = vmatmul.mubr.bf16.gmra.mrb[0].mxu0 %v402
      %v512 = vpop.f32.mrb[0].mxu0
      %v513 = vadd.f32 0.0, %v512
      %v514 = vpop.f32.mrb[0].mxu0
      %v515 = vpop.f32.mrb[0].mxu0
      %v516 = vadd.f32 0.0, %v515
      %v517 = vpop.f32.mrb[0].mxu0
      %518 = vmatprep.mubr.bf16.mxu0 0
      %519 = vmatmul.mubr.bf16.gmra.mrb[0].mxu0 %v405
      %v520 = vpop.f32.mrb[0].mxu0
      %v521 = vadd.f32 0.0, %v520
      %v522 = vpop.f32.mrb[0].mxu0
      %v523 = vpop.f32.mrb[0].mxu0
      %v524 = vadd.f32 0.0, %v523
      %v525 = vpop.f32.mrb[0].mxu0
      %526 = vmatprep.mubr.bf16.mxu0 0
      %527 = vmatmul.mubr.bf16.gmra.mrb[0].mxu0 %v408
      %v528 = vpop.f32.mrb[0].mxu0
      %v529 = vadd.f32 0.0, %v528
      %v530 = vpop.f32.mrb[0].mxu0
      %v531 = vpop.f32.mrb[0].mxu0
      %v532 = vadd.f32 0.0, %v531
      %v533 = vpop.f32.mrb[0].mxu0
      %534 = vmatprep.mubr.bf16.mxu0 0
      %535 = vmatmul.mubr.bf16.gmra.mrb[0].mxu0 %v411
      %v536 = vpop.f32.mrb[0].mxu0
      %v537 = vadd.f32 0.0, %v536
      %v538 = vpop.f32.mrb[0].mxu0
      %v539 = vpop.f32.mrb[0].mxu0
      %v540 = vadd.f32 0.0, %v539
      %v541 = vpop.f32.mrb[0].mxu0
      %542 = vmatprep.mubr.bf16.mxu0 0
      %543 = vmatmul.mubr.bf16.gmra.mrb[0].mxu0 %v414
      %v544 = vpop.f32.mrb[0].mxu0
      %v545 = vadd.f32 0.0, %v544
      %v546 = vpop.f32.mrb[0].mxu0
      %v547 = vpop.f32.mrb[0].mxu0
      %v548 = vadd.f32 0.0, %v547
      %v549 = vpop.f32.mrb[0].mxu0
      %550 = vmatprep.mubr.bf16.mxu0 0
      %551 = vmatmul.mubr.bf16.gmra.mrb[0].mxu0 %v417
      %v552 = vpop.f32.mrb[0].mxu0
      %v553 = vadd.f32 0.0, %v552
      %v554 = vpop.f32.mrb[0].mxu0
      %v555 = vpop.f32.mrb[0].mxu0
      %v556 = vadd.f32 0.0, %v555
      %v557 = vpop.f32.mrb[0].mxu0
      %558 = vmatprep.mubr.bf16.mxu0 0
      %559 = vmatmul.mubr.bf16.gmra.mrb[0].mxu0 %v420
      %v560 = vpop.f32.mrb[0].mxu0
      %v561 = vadd.f32 0.0, %v560
      %v562 = vpop.f32.mrb[0].mxu0
      %v563 = vpop.f32.mrb[0].mxu0
      %v564 = vadd.f32 0.0, %v563
      %v565 = vpop.f32.mrb[0].mxu0
      %566 = vmatprep.mubr.bf16.mxu0 0
      %567 = vmatmul.mubr.bf16.gmra.mrb[0].mxu0 %v423
      %v568 = vpop.f32.mrb[0].mxu0
      %v569 = vadd.f32 0.0, %v568
      %v570 = vpop.f32.mrb[0].mxu0
      %v571 = vpop.f32.mrb[0].mxu0
      %v572 = vadd.f32 0.0, %v571
      %v573 = vpop.f32.mrb[0].mxu0
      %574 = vmatprep.mubr.bf16.mxu0 0
      %575 = vmatmul.mubr.bf16.gmra.mrb[0].mxu0 %v426
      %v576 = vpop.f32.mrb[0].mxu0
      %v577 = vadd.f32 0.0, %v576
      %v578 = vpop.f32.mrb[0].mxu0
      %v579 = vpop.f32.mrb[0].mxu0
      %v580 = vadd.f32 0.0, %v579
      %v581 = vpop.f32.mrb[0].mxu0
      %582 = vmatprep.mubr.bf16.mxu0 0
      %583 = vmatmul.mubr.bf16.gmra.mrb[0].mxu0 %v429
      %v584 = vpop.f32.mrb[0].mxu0
      %v585 = vadd.f32 0.0, %v584
      %v586 = vpop.f32.mrb[0].mxu0
      %v587 = vpop.f32.mrb[0].mxu0
      %v588 = vadd.f32 0.0, %v587
      %v589 = vpop.f32.mrb[0].mxu0
      %590 = vmatprep.mubr.bf16.mxu0 0
      %591 = vmatmul.mubr.bf16.gmra.mrb[0].mxu0 %v432
      %v592 = vpop.f32.mrb[0].mxu0
      %v593 = vadd.f32 0.0, %v592
      %v594 = vpop.f32.mrb[0].mxu0
      %v595 = vpop.f32.mrb[0].mxu0
      %v596 = vadd.f32 0.0, %v595
      %v597 = vpop.f32.mrb[0].mxu0
      %598 = vdwg.mxu0
      %599 = vmatprep.subr.mxu0 0.0
      %600 = vmatpush1.msra.mxu0 %v473
      %601 = vmatprep.subr.mxu0 0.0
      %602 = vmatpush1.msra.mxu0 %v476
      %603 = vmatprep.subr.mxu0 0.0
      %604 = vmatpush1.msra.mxu0 %v481
      %605 = vmatprep.subr.mxu0 0.0
      %606 = vmatpush1.msra.mxu0 %v484
      %607 = vmatprep.subr.mxu0 0.0
      %608 = vmatpush1.msra.mxu0 %v489
      %609 = vmatprep.subr.mxu0 0.0
      %610 = vmatpush1.msra.mxu0 %v492
      %611 = vmatprep.subr.mxu0 0.0
      %612 = vmatpush1.msra.mxu0 %v497
      %613 = vmatprep.subr.mxu0 0.0
      %614 = vmatpush1.msra.mxu0 %v500
      %615 = vmatprep.subr.mxu0 0.0
      %616 = vmatpush1.msra.mxu0 %v505
      %617 = vmatprep.subr.mxu0 0.0
      %618 = vmatpush1.msra.mxu0 %v508
      %619 = vmatprep.subr.mxu0 0.0
      %620 = vmatpush1.msra.mxu0 %v513
      %621 = vmatprep.subr.mxu0 0.0
      %622 = vmatpush1.msra.mxu0 %v516
      %623 = vmatprep.subr.mxu0 0.0
      %624 = vmatpush1.msra.mxu0 %v521
      %625 = vmatprep.subr.mxu0 0.0
      %626 = vmatpush1.msra.mxu0 %v524
      %627 = vmatprep.subr.mxu0 0.0
      %628 = vmatpush1.msra.mxu0 %v529
      %629 = vmatprep.subr.mxu0 0.0
      %630 = vmatpush1.msra.mxu0 %v532
      %631 = vmatprep.subr.mxu0 0.0
      %632 = vmatpush1.msra.mxu0 %v537
      %633 = vmatprep.subr.mxu0 0.0
      %634 = vmatpush1.msra.mxu0 %v540
      %635 = vmatprep.subr.mxu0 0.0
      %636 = vmatpush1.msra.mxu0 %v545
      %637 = vmatprep.subr.mxu0 0.0
      %638 = vmatpush1.msra.mxu0 %v548
      %639 = vmatprep.subr.mxu0 0.0
      %640 = vmatpush1.msra.mxu0 %v553
      %641 = vmatprep.subr.mxu0 0.0
      %642 = vmatpush1.msra.mxu0 %v556
      %643 = vmatprep.subr.mxu0 0.0
      %644 = vmatpush1.msra.mxu0 %v561
      %645 = vmatprep.subr.mxu0 0.0
      %646 = vmatpush1.msra.mxu0 %v564
      %647 = vmatprep.subr.mxu0 0.0
      %648 = vmatpush1.msra.mxu0 %v569
      %649 = vmatprep.subr.mxu0 0.0
      %650 = vmatpush1.msra.mxu0 %v572
      %651 = vmatprep.subr.mxu0 0.0
      %652 = vmatpush1.msra.mxu0 %v577
      %653 = vmatprep.subr.mxu0 0.0
      %654 = vmatpush1.msra.mxu0 %v580
      %655 = vmatprep.subr.mxu0 0.0
      %656 = vmatpush1.msra.mxu0 %v585
      %657 = vmatprep.subr.mxu0 0.0
      %658 = vmatpush1.msra.mxu0 %v588
      %659 = vmatprep.subr.mxu0 0.0
      %660 = vmatpush1.msra.mxu0 %v593
      %661 = vmatprep.subr.mxu0 0.0
      %662 = vmatpush1.msra.mxu0 %v596
      %663 = vmatprep.mubr.f32.mxu0 1.0
      %664 = vmatmul.mubr.f32.gmra.mrb[0].mxu0 1.0
      %v665 = vpop.f32.mrb[0].mxu0
      %v666 = vadd.f32 0.0, %v665
      %v667 = vpop.f32.mrb[0].mxu0
      %668 = vdwg.mxu0
      %v669 = vmul.f32 %v666, 0.00390625
      %670 = vst [vmem:[#allocation2] sm:$0xff] %v473
      %671 = vst [vmem:[#allocation2 + $0x8] sm:$0xff] %v476
      %672 = vst [vmem:[#allocation2 + $0x10] sm:$0xff] %v481
      %673 = vst [vmem:[#allocation2 + $0x18] sm:$0xff] %v484
      %674 = vst [vmem:[#allocation2 + $0x20] sm:$0xff] %v489
      %675 = vst [vmem:[#allocation2 + $0x28] sm:$0xff] %v492
      %676 = vst [vmem:[#allocation2 + $0x30] sm:$0xff] %v497
      %677 = vst [vmem:[#allocation2 + $0x38] sm:$0xff] %v500
      %678 = vst [vmem:[#allocation2 + $0x40] sm:$0xff] %v505
      %679 = vst [vmem:[#allocation2 + $0x48] sm:$0xff] %v508
      %680 = vst [vmem:[#allocation2 + $0x50] sm:$0xff] %v513
      %681 = vst [vmem:[#allocation2 + $0x58] sm:$0xff] %v516
      %682 = vst [vmem:[#allocation2 + $0x60] sm:$0xff] %v521
      %683 = vst [vmem:[#allocation2 + $0x68] sm:$0xff] %v524
      %684 = vst [vmem:[#allocation2 + $0x70] sm:$0xff] %v529
      %685 = vst [vmem:[#allocation2 + $0x78] sm:$0xff] %v532
      %686 = vst [vmem:[#allocation2 + $0x80] sm:$0xff] %v537
      %687 = vst [vmem:[#allocation2 + $0x88] sm:$0xff] %v540
      %688 = vst [vmem:[#allocation2 + $0x90] sm:$0xff] %v545
      %689 = vst [vmem:[#allocation2 + $0x98] sm:$0xff] %v548
      %690 = vst [vmem:[#allocation2 + $0xa0] sm:$0xff] %v553
      %691 = vst [vmem:[#allocation2 + $0xa8] sm:$0xff] %v556
      %692 = vst [vmem:[#allocation2 + $0xb0] sm:$0xff] %v561
      %693 = vst [vmem:[#allocation2 + $0xb8] sm:$0xff] %v564
      %694 = vst [vmem:[#allocation2 + $0xc0] sm:$0xff] %v569
      %695 = vst [vmem:[#allocation2 + $0xc8] sm:$0xff] %v572
      %696 = vst [vmem:[#allocation2 + $0xd0] sm:$0xff] %v577
      %697 = vst [vmem:[#allocation2 + $0xd8] sm:$0xff] %v580
      %698 = vst [vmem:[#allocation2 + $0xe0] sm:$0xff] %v585
      %699 = vst [vmem:[#allocation2 + $0xe8] sm:$0xff] %v588
      %700 = vst [vmem:[#allocation2 + $0xf0] sm:$0xff] %v593
      %701 = vst [vmem:[#allocation2 + $0xf8] sm:$0xff] %v596
      %v702 = vpack.c.bf16 %v669, %v669
      %v703 = vld [vmem:[%s2] sm:$0xf]
      %v704 = vld [vmem:[%s2 + $0x4] sm:$0xf]
      %v705 = vld [vmem:[%s2 + $0x8] sm:$0xf]
      %v706 = vld [vmem:[%s2 + $0xc] sm:$0xf]
      %v707 = vld [vmem:[%s2 + $0x10] sm:$0xf]
      %v708 = vld [vmem:[%s2 + $0x14] sm:$0xf]
      %v709 = vld [vmem:[%s2 + $0x18] sm:$0xf]
      %v710 = vld [vmem:[%s2 + $0x1c] sm:$0xf]
      %v711 = vld [vmem:[%s2 + $0x20] sm:$0xf]
      %v712 = vld [vmem:[%s2 + $0x24] sm:$0xf]
      %v713 = vld [vmem:[%s2 + $0x28] sm:$0xf]
      %v714 = vld [vmem:[%s2 + $0x2c] sm:$0xf]
      %v715 = vld [vmem:[%s2 + $0x30] sm:$0xf]
      %v716 = vld [vmem:[%s2 + $0x34] sm:$0xf]
      %v717 = vld [vmem:[%s2 + $0x38] sm:$0xf]
      %v718 = vld [vmem:[%s2 + $0x3c] sm:$0xf]
      %v719 = vld [vmem:[%s3] sm:$0x1]
      %v736 = vunpack.c.l.b16 %v703
      %v737 = vunpack.c.l.b16 %v704
      %v738 = vunpack.c.l.b16 %v705
      %v739 = vunpack.c.l.b16 %v706
      %v740 = vunpack.c.l.b16 %v707
      %v741 = vunpack.c.l.b16 %v708
      %v742 = vunpack.c.l.b16 %v709
      %v743 = vunpack.c.l.b16 %v710
      %v744 = vunpack.c.l.b16 %v711
      %v745 = vunpack.c.l.b16 %v712
      %v746 = vunpack.c.l.b16 %v713
      %v747 = vunpack.c.l.b16 %v714
      %v748 = vunpack.c.l.b16 %v715
      %v749 = vunpack.c.l.b16 %v716
      %v750 = vunpack.c.l.b16 %v717
      %v751 = vunpack.c.l.b16 %v718
      %v752 = vpack.c.b16 %v737, %v736
      %v753 = vpack.c.b16 %v739, %v738
      %v754 = vpack.c.b16 %v741, %v740
      %v755 = vpack.c.b16 %v743, %v742
      %v756 = vpack.c.b16 %v745, %v744
      %v757 = vpack.c.b16 %v747, %v746
      %v758 = vpack.c.b16 %v749, %v748
      %v759 = vpack.c.b16 %v751, %v750
      %768 = vmatprep.subr.bf16.mxu0 0
      %769 = vmatpush1.bf16.msra.mxu0 %v752
      %770 = vmatprep.subr.bf16.mxu0 0
      %771 = vmatpush1.bf16.msra.mxu0 %v753
      %772 = vmatprep.subr.bf16.mxu0 0
      %773 = vmatpush1.bf16.msra.mxu0 %v754
      %774 = vmatprep.subr.bf16.mxu0 0
      %775 = vmatpush1.bf16.msra.mxu0 %v755
      %776 = vmatprep.subr.bf16.mxu0 0
      %777 = vmatpush1.bf16.msra.mxu0 %v756
      %778 = vmatprep.subr.bf16.mxu0 0
      %779 = vmatpush1.bf16.msra.mxu0 %v757
      %780 = vmatprep.subr.bf16.mxu0 0
      %781 = vmatpush1.bf16.msra.mxu0 %v758
      %782 = vmatprep.subr.bf16.mxu0 0
      %783 = vmatpush1.bf16.msra.mxu0 %v759
      %784 = vmatprep.subr.bf16.mxu0 0
      %785 = vmatpush1.bf16.msra.mxu0 0
      %786 = vmatprep.subr.bf16.mxu0 0
      %787 = vmatpush1.bf16.msra.mxu0 0
      %788 = vmatprep.subr.bf16.mxu0 0
      %789 = vmatpush1.bf16.msra.mxu0 0
      %790 = vmatprep.subr.bf16.mxu0 0
      %791 = vmatpush1.bf16.msra.mxu0 0
      %792 = vmatprep.subr.bf16.mxu0 0
      %793 = vmatpush1.bf16.msra.mxu0 0
      %794 = vmatprep.subr.bf16.mxu0 0
      %795 = vmatpush1.bf16.msra.mxu0 0
      %796 = vmatprep.subr.bf16.mxu0 0
      %797 = vmatpush1.bf16.msra.mxu0 0
      %798 = vmatprep.subr.bf16.mxu0 0
      %799 = vmatpush1.bf16.msra.mxu0 0
      %800 = vmatprep.mubr.bf16.mxu0 0
      %801 = vmatmul.mubr.bf16.gmra.mrb[0].mxu0 %v702
      %v802 = vpop.f32.mrb[0].mxu0
      %v803 = vadd.f32 %v719, %v802
      %v804 = vpop.f32.mrb[0].mxu0
      %v805 = vpop.f32.mrb[0].mxu0
      %v806 = vpop.f32.mrb[0].mxu0
      %807 = vdwg.mxu0
      %v808 = vmax.f32 %v803, 0.0
      %v809 = vpack.c.bf16 %v808, %v808
      %v810 = vld [vmem:[%s4] sm:$0xf]
      %v811 = vld [vmem:[%s5] sm:$0x1]
      %vm812 = vcmask 64512
      %v814 = vsel %vm812, %v809, 0
      %vm816 = vcmask 1043456
      %v818 = vsel %vm816, %v810, 0
      %820 = vmatprep.subr.bf16.mxu0 0
      %821 = vmatpush1.bf16.msra.mxu0 %v818
      %822 = vmatprep.subr.bf16.mxu0 0
      %823 = vmatpush1.bf16.msra.mxu0 0
      %824 = vmatprep.subr.bf16.mxu0 0
      %825 = vmatpush1.bf16.msra.mxu0 0
      %826 = vmatprep.subr.bf16.mxu0 0
      %827 = vmatpush1.bf16.msra.mxu0 0
      %828 = vmatprep.subr.bf16.mxu0 0
      %829 = vmatpush1.bf16.msra.mxu0 0
      %830 = vmatprep.subr.bf16.mxu0 0
      %831 = vmatpush1.bf16.msra.mxu0 0
      %832 = vmatprep.subr.bf16.mxu0 0
      %833 = vmatpush1.bf16.msra.mxu0 0
      %834 = vmatprep.subr.bf16.mxu0 0
      %835 = vmatpush1.bf16.msra.mxu0 0
      %836 = vmatprep.subr.bf16.mxu0 0
      %837 = vmatpush1.bf16.msra.mxu0 0
      %838 = vmatprep.subr.bf16.mxu0 0
      %839 = vmatpush1.bf16.msra.mxu0 0
      %840 = vmatprep.subr.bf16.mxu0 0
      %841 = vmatpush1.bf16.msra.mxu0 0
      %842 = vmatprep.subr.bf16.mxu0 0
      %843 = vmatpush1.bf16.msra.mxu0 0
      %844 = vmatprep.subr.bf16.mxu0 0
      %845 = vmatpush1.bf16.msra.mxu0 0
      %846 = vmatprep.subr.bf16.mxu0 0
      %847 = vmatpush1.bf16.msra.mxu0 0
      %848 = vmatprep.subr.bf16.mxu0 0
      %849 = vmatpush1.bf16.msra.mxu0 0
      %850 = vmatprep.subr.bf16.mxu0 0
      %851 = vmatpush1.bf16.msra.mxu0 0
      %852 = vmatprep.mubr.bf16.mxu0 0
      %853 = vmatmul.mubr.bf16.gmra.mrb[0].mxu0 %v814
      %v854 = vpop.f32.mrb[0].mxu0
      %v855 = vadd.f32 %v811, %v854
      %v856 = vpop.f32.mrb[0].mxu0
      %v857 = vpop.f32.mrb[0].mxu0
      %v858 = vpop.f32.mrb[0].mxu0
      %859 = vdwg.mxu0
      %v860 = vsub.f32 0.0, %v855
      %v861 = vmul.f32 %v860, 1.442695
      %v862 = vpow.pop %v861
      %v863 = vadd.f32 %v862, 1.0
      %v864 = vrcp.pop %v863
      %v865 = vmul.f32 1.0, %v864
      %v866 = vlaneseq
      %v867 = vshrl.u32 %v866, 7
      %v868 = vsub.s32 0, %v867
      %v869 = vrot.slane %v865, %v868
      %v870 = vlaneseq
      %v871 = vshrl.u32 %v870, 7
      %vm872 = vcmp.ge.s32.totalorder %v871, 1
      %v873 = vld [vmem:[#allocation2] ss:$2 sm:$0xff]
      %s874 = scalar_lea.vmem [#allocation2], 1
      %v875 = vld [vmem:[%s874] ss:$2 sm:$0xff]
      %s876 = scalar_lea.vmem [#allocation2], 16
      %v877 = vld [vmem:[%s876] ss:$2 sm:$0xff]
      %s878 = scalar_lea.vmem [#allocation2], 17
      %v879 = vld [vmem:[%s878] ss:$2 sm:$0xff]
      %v880 = vmax.f32 %v873, %v877
      %v881 = vmax.f32 %v875, %v879
      %v882 = vrot.slane %v881, 7
      %v883 = vsel %vm872, %v882, %v880
      %v884 = vmax.f32 %v880, %v881
      %v885 = vmax.f32 %v884, %v883
      %v886 = vmul.f32 %v885, %v869
      %887 = vst [vmem:[%s251] sm:$0xff] %v886
      %v888 = vld [vmem:[%s876] ss:$2 sm:$0xff]
      %v889 = vld [vmem:[%s878] ss:$2 sm:$0xff]
      %s890 = scalar_lea.vmem [#allocation2], 32
      %v891 = vld [vmem:[%s890] ss:$2 sm:$0xff]
      %s892 = scalar_lea.vmem [#allocation2], 33
      %v893 = vld [vmem:[%s892] ss:$2 sm:$0xff]
      %v894 = vmax.f32 %v888, %v891
      %v895 = vmax.f32 %v889, %v893
      %s896 = scalar_lea.vmem [#allocation2], 48
      %v897 = vld [vmem:[%s896] ss:$2 sm:$0xff]
      %s898 = scalar_lea.vmem [#allocation2], 49
      %v899 = vld [vmem:[%s898] ss:$2 sm:$0xff]
      %v900 = vmax.f32 %v894, %v897
      %v901 = vmax.f32 %v895, %v899
      %v902 = vrot.slane %v901, 7
      %v903 = vsel %vm872, %v902, %v900
      %v904 = vmax.f32 %v900, %v901
      %v905 = vmax.f32 %v904, %v903
      %v906 = vmul.f32 %v905, %v869
      %907 = vst [vmem:[%s251 + $0x8] sm:$0xff] %v906
      %v908 = vld [vmem:[%s896] ss:$2 sm:$0xff]
      %v909 = vld [vmem:[%s898] ss:$2 sm:$0xff]
      %s910 = scalar_lea.vmem [#allocation2], 64
      %v911 = vld [vmem:[%s910] ss:$2 sm:$0xff]
      %s912 = scalar_lea.vmem [#allocation2], 65
      %v913 = vld [vmem:[%s912] ss:$2 sm:$0xff]
      %v914 = vmax.f32 %v908, %v911
      %v915 = vmax.f32 %v909, %v913
      %s916 = scalar_lea.vmem [#allocation2], 80
      %v917 = vld [vmem:[%s916] ss:$2 sm:$0xff]
      %s918 = scalar_lea.vmem [#allocation2], 81
      %v919 = vld [vmem:[%s918] ss:$2 sm:$0xff]
      %v920 = vmax.f32 %v914, %v917
      %v921 = vmax.f32 %v915, %v919
      %v922 = vrot.slane %v921, 7
      %v923 = vsel %vm872, %v922, %v920
      %v924 = vmax.f32 %v920, %v921
      %v925 = vmax.f32 %v924, %v923
      %v926 = vmul.f32 %v925, %v869
      %927 = vst [vmem:[%s251 + $0x10] sm:$0xff] %v926
      %v928 = vld [vmem:[%s916] ss:$2 sm:$0xff]
      %v929 = vld [vmem:[%s918] ss:$2 sm:$0xff]
      %s930 = scalar_lea.vmem [#allocation2], 96
      %v931 = vld [vmem:[%s930] ss:$2 sm:$0xff]
      %s932 = scalar_lea.vmem [#allocation2], 97
      %v933 = vld [vmem:[%s932] ss:$2 sm:$0xff]
      %v934 = vmax.f32 %v928, %v931
      %v935 = vmax.f32 %v929, %v933
      %s936 = scalar_lea.vmem [#allocation2], 112
      %v937 = vld [vmem:[%s936] ss:$2 sm:$0xff]
      %s938 = scalar_lea.vmem [#allocation2], 113
      %v939 = vld [vmem:[%s938] ss:$2 sm:$0xff]
      %v940 = vmax.f32 %v934, %v937
      %v941 = vmax.f32 %v935, %v939
      %v942 = vrot.slane %v941, 7
      %v943 = vsel %vm872, %v942, %v940
      %v944 = vmax.f32 %v940, %v941
      %v945 = vmax.f32 %v944, %v943
      %v946 = vmul.f32 %v945, %v869
      %947 = vst [vmem:[%s251 + $0x18] sm:$0xff] %v946
      %v948 = vld [vmem:[%s936] ss:$2 sm:$0xff]
      %v949 = vld [vmem:[%s938] ss:$2 sm:$0xff]
      %s950 = scalar_lea.vmem [#allocation2], 128
      %v951 = vld [vmem:[%s950] ss:$2 sm:$0xff]
      %s952 = scalar_lea.vmem [#allocation2], 129
      %v953 = vld [vmem:[%s952] ss:$2 sm:$0xff]
      %v954 = vmax.f32 %v948, %v951
      %v955 = vmax.f32 %v949, %v953
      %s956 = scalar_lea.vmem [#allocation2], 144
      %v957 = vld [vmem:[%s956] ss:$2 sm:$0xff]
      %s958 = scalar_lea.vmem [#allocation2], 145
      %v959 = vld [vmem:[%s958] ss:$2 sm:$0xff]
      %v960 = vmax.f32 %v954, %v957
      %v961 = vmax.f32 %v955, %v959
      %v962 = vrot.slane %v961, 7
      %v963 = vsel %vm872, %v962, %v960
      %v964 = vmax.f32 %v960, %v961
      %v965 = vmax.f32 %v964, %v963
      %v966 = vmul.f32 %v965, %v869
      %967 = vst [vmem:[%s251 + $0x20] sm:$0xff] %v966
      %v968 = vld [vmem:[%s956] ss:$2 sm:$0xff]
      %v969 = vld [vmem:[%s958] ss:$2 sm:$0xff]
      %s970 = scalar_lea.vmem [#allocation2], 160
      %v971 = vld [vmem:[%s970] ss:$2 sm:$0xff]
      %s972 = scalar_lea.vmem [#allocation2], 161
      %v973 = vld [vmem:[%s972] ss:$2 sm:$0xff]
      %v974 = vmax.f32 %v968, %v971
      %v975 = vmax.f32 %v969, %v973
      %s976 = scalar_lea.vmem [#allocation2], 176
      %v977 = vld [vmem:[%s976] ss:$2 sm:$0xff]
      %s978 = scalar_lea.vmem [#allocation2], 177
      %v979 = vld [vmem:[%s978] ss:$2 sm:$0xff]
      %v980 = vmax.f32 %v974, %v977
      %v981 = vmax.f32 %v975, %v979
      %v982 = vrot.slane %v981, 7
      %v983 = vsel %vm872, %v982, %v980
      %v984 = vmax.f32 %v980, %v981
      %v985 = vmax.f32 %v984, %v983
      %v986 = vmul.f32 %v985, %v869
      %987 = vst [vmem:[%s251 + $0x28] sm:$0xff] %v986
      %v988 = vld [vmem:[%s976] ss:$2 sm:$0xff]
      %v989 = vld [vmem:[%s978] ss:$2 sm:$0xff]
      %s990 = scalar_lea.vmem [#allocation2], 192
      %v991 = vld [vmem:[%s990] ss:$2 sm:$0xff]
      %s992 = scalar_lea.vmem [#allocation2], 193
      %v993 = vld [vmem:[%s992] ss:$2 sm:$0xff]
      %v994 = vmax.f32 %v988, %v991
      %v995 = vmax.f32 %v989, %v993
      %s996 = scalar_lea.vmem [#allocation2], 208
      %v997 = vld [vmem:[%s996] ss:$2 sm:$0xff]
      %s998 = scalar_lea.vmem [#allocation2], 209
      %v999 = vld [vmem:[%s998] ss:$2 sm:$0xff]
      %v1000 = vmax.f32 %v994, %v997
      %v1001 = vmax.f32 %v995, %v999
      %v1002 = vrot.slane %v1001, 7
      %v1003 = vsel %vm872, %v1002, %v1000
      %v1004 = vmax.f32 %v1000, %v1001
      %v1005 = vmax.f32 %v1004, %v1003
      %v1006 = vmul.f32 %v1005, %v869
      %1007 = vst [vmem:[%s251 + $0x30] sm:$0xff] %v1006
      %v1008 = vld [vmem:[%s996] ss:$2 sm:$0xff]
      %v1009 = vld [vmem:[%s998] ss:$2 sm:$0xff]
      %s1010 = scalar_lea.vmem [#allocation2], 224
      %v1011 = vld [vmem:[%s1010] ss:$2 sm:$0xff]
      %s1012 = scalar_lea.vmem [#allocation2], 225
      %v1013 = vld [vmem:[%s1012] ss:$2 sm:$0xff]
      %v1014 = vmax.f32 %v1008, %v1011
      %v1015 = vmax.f32 %v1009, %v1013
      %s1016 = scalar_lea.vmem [#allocation2], 240
      %v1017 = vld [vmem:[%s1016] ss:$2 sm:$0xff]
      %s1018 = scalar_lea.vmem [#allocation2], 241
      %v1019 = vld [vmem:[%s1018] ss:$2 sm:$0xff]
      %v1020 = vmax.f32 %v1014, %v1017
      %v1021 = vmax.f32 %v1015, %v1019
      %v1022 = vrot.slane %v1021, 7
      %v1023 = vsel %vm872, %v1022, %v1020
      %v1024 = vmax.f32 %v1020, %v1021
      %v1025 = vmax.f32 %v1024, %v1023
      %v1026 = vmul.f32 %v1025, %v869
      %1027 = vst [vmem:[%s251 + $0x38] sm:$0xff] %v1026
      %p1028 = scmp.lt.s32.totalorder %s17, 1
      %s1029 = scalar_select %p1028, %s17, 1
      %s1030 = smul.addr %s1029, 8
      %s1031 = smul.addr %s1030, 8
      %s1032 = scalar_lea.vmem %s6, %s1031
      // Predicated region
      $region45: #{tokenizer_se_forward.1} parent=43 // pred_check
        %p1033 = pneg %p166
      $region46: #{tokenizer_se_forward.1} parent=43 // pred_check_branch
        %1035 = sbr.rel (%p1033) target = $region48
      $region47: #{tokenizer_se_forward.1} parent=43 // pred_region
        _
      $region48: #{tokenizer_se_forward.1} parent=43 // pred_fallthru
        _
    $region44: #{tokenizer_se_forward.1} parent=5 // pred_fallthru
      _
    %p1036 = scmp.le.s32.totalorder 2, %s12
    // Predicated region
    $region49: #{tokenizer_se_forward.1} parent=5 // pred_check
      %p1037 = pneg %p1036
    $region50: #{tokenizer_se_forward.1} parent=5 // pred_check_branch
      %1039 = sbr.rel (%p1037) target = $region52
    $region51: #{tokenizer_se_forward.1} parent=5 // pred_region
      %s1040 = ssub.s32 %s12, 2
      // Predicated region
      $region53: #{tokenizer_se_forward.1} parent=51 // pred_check
        %p1041 = pneg %p172
      $region54: #{tokenizer_se_forward.1} parent=51 // pred_check_branch
        %1043 = sbr.rel (%p1041) target = $region56
      $region55: #{tokenizer_se_forward.1} parent=51 // pred_region
        %p1044 = scmp.lt.s32.totalorder %s18, 1
        %s1045 = scalar_select %p1044, %s18, 1
        %s1046 = smul.addr %s1045, 8
        %s1047 = smul.addr %s1046, 8
        %s1048 = scalar_lea.vmem %s6, %s1047
      $region56: #{tokenizer_se_forward.1} parent=51 // pred_fallthru
        _
    $region52: #{tokenizer_se_forward.1} parent=5 // pred_fallthru
      _
  $region6: #{tokenizer_se_forward.1} parent=0 // loop_footer
    %s16 = sadd.s32 1, %s12
  $region7: #{tokenizer_se_forward.1} parent=0 // loop_footer_branch
    %11 = sbr.rel target = $region3
  $region8: #{tokenizer_se_forward.1} parent=0 // loop_exit
    _

</llo_original>
